<compile_context>
chip_gen: v7x
topology: tpu7x:2x2x1
jax: 0.10.0
libtpu: 0.0.40
codegen_flags: <defaults>
</compile_context>

<pallas_src>
import functools
import numpy as np
import jax
import jax.numpy as jnp
from jax import lax
from jax.experimental import pallas as pl
from jax.experimental.pallas import tpu as pltpu


def _conv_row_matrices(w, width):
    """Toeplitz matrices for a 3x3 conv (stride 1, pad 1) on the channel-minor
    layout, with the W-direction zero padding folded in.
    w: (Cout, Cin, 3, 3) PyTorch OIHW.  Returns (3, width*Cin, width*Cout)."""
    w = np.asarray(w, dtype=np.float32)
    cout, cin = w.shape[0], w.shape[1]
    M = np.zeros((3, width * cin, width * cout), dtype=np.float32)
    for dy in range(3):
        for x in range(width):
            for dx in range(3):
                xin = x + dx - 1
                if 0 <= xin < width:
                    M[dy, xin * cin:(xin + 1) * cin,
                          x * cout:(x + 1) * cout] = w[:, :, dy, dx].T
    return M


def _basic_kernel(*refs, use_prelu0, use_shortcut_conv):
    it = iter(refs)
    x_ref = next(it)
    mf_ref = next(it)          # (R,1) mask: 0 on first row of each image
    ml_ref = next(it)          # (R,1) mask: 0 on last  row of each image
    a0_ref = next(it) if use_prelu0 else None
    m1_ref = next(it); b1_ref = next(it); a1_ref = next(it)
    m2_ref = next(it); b2_ref = next(it)
    if use_shortcut_conv:
        msc_ref = next(it); bsc_ref = next(it)
    o_ref = next(it)
    zp1_ref = next(it); zp2_ref = next(it)

    R = x_ref.shape[0]
    x = x_ref[...]                                  # (R, W*C0)
    mf = mf_ref[...]
    ml = ml_ref[...]

    h = x
    if use_prelu0:
        h = jnp.where(h >= 0.0, h, a0_ref[...] * h)

    # --- conv1: lane-dense slab with 1-row halos top/bottom; masks kill
    #     cross-image row leakage inside the batch tile. ---
    L0 = zp1_ref.shape[1]
    zrow0 = jnp.zeros((1, L0), jnp.float32)
    zp1_ref[0:1, :] = zrow0
    zp1_ref[R + 1:R + 2, :] = zrow0
    zp1_ref[1:R + 1, :] = h
    h_up = zp1_ref[0:R, :] * mf                     # row t-1 (0 at image tops)
    h_dn = zp1_ref[2:R + 2, :] * ml                 # row t+1 (0 at image bottoms)

    acc = jnp.dot(h, m1_ref[1], preferred_element_type=jnp.float32)
    acc = acc + jnp.dot(h_up, m1_ref[0], preferred_element_type=jnp.float32)
    acc = acc + jnp.dot(h_dn, m1_ref[2], preferred_element_type=jnp.float32)
    acc = acc + b1_ref[...]
    acc = jnp.where(acc >= 0.0, acc, a1_ref[...] * acc)

    # --- conv2 ---
    L1 = zp2_ref.shape[1]
    zrow1 = jnp.zeros((1, L1), jnp.float32)
    zp2_ref[0:1, :] = zrow1
    zp2_ref[R + 1:R + 2, :] = zrow1
    zp2_ref[1:R + 1, :] = acc
    a_up = zp2_ref[0:R, :] * mf
    a_dn = zp2_ref[2:R + 2, :] * ml

    y = jnp.dot(acc, m2_ref[1], preferred_element_type=jnp.float32)
    y = y + jnp.dot(a_up, m2_ref[0], preferred_element_type=jnp.float32)
    y = y + jnp.dot(a_dn, m2_ref[2], preferred_element_type=jnp.float32)
    y = y + b2_ref[...]

    # --- residual ---
    if use_shortcut_conv:
        y = y + jnp.dot(x, msc_ref[...], preferred_element_type=jnp.float32) + bsc_ref[...]
    else:
        y = y + x

    o_ref[...] = y.astype(o_ref.dtype)


def basic_forward(x_nchw, params, str_type):
    N, C0, H, W = x_nchw.shape
    w1, b1, w2, b2 = (params[k] for k in ("w1", "b1", "w2", "b2"))
    C1, C2 = int(w1.shape[0]), int(w2.shape[0])
    use_prelu0 = (str_type == "relu-conv-relu-conv")
    use_shortcut_conv = (C0 != C2)

    # batch tile: largest divisor of N with B_T*H <= 256 (fill MXU rows,
    # amortize per-step pipeline overhead).
    B_T = 1
    for d in range(1, N + 1):
        if N % d == 0 and d * H <= 256:
            B_T = d
    R = B_T * H

    # Precomputed constants (wrapper-side, once).
    M1 = jnp.asarray(_conv_row_matrices(w1, W))              # (3, W*C0, W*C1)
    M2 = jnp.asarray(_conv_row_matrices(w2, W))              # (3, W*C1, W*C2)
    b1t = jnp.tile(jnp.asarray(b1, jnp.float32), W).reshape(1, W * C1)
    b2t = jnp.tile(jnp.asarray(b2, jnp.float32), W).reshape(1, W * C2)
    a1t = jnp.tile(jnp.asarray(params["a1"], jnp.float32), W).reshape(1, W * C1)
    rows = np.arange(R)
    mf = jnp.asarray((rows % H != 0).astype(np.float32).reshape(R, 1))
    ml = jnp.asarray((rows % H != H - 1).astype(np.float32).reshape(R, 1))

    # NCHW -> (N*H, W*C0) channel-minor slab (layout plumbing only).
    x2d = jnp.transpose(x_nchw, (0, 2, 3, 1)).reshape(N * H, W * C0).astype(jnp.float32)

    def full(arr):
        nd = arr.ndim
        return pl.BlockSpec(arr.shape, lambda i, _nd=nd: (0,) * _nd)

    operands = [x2d, mf, ml]
    in_specs = [pl.BlockSpec((R, W * C0), lambda i: (i, 0)), full(mf), full(ml)]
    if use_prelu0:
        a0t = jnp.tile(jnp.asarray(params["a0"], jnp.float32), W).reshape(1, W * C0)
        operands.append(a0t); in_specs.append(full(a0t))
    operands += [M1, b1t, a1t, M2, b2t]
    in_specs += [full(M1), full(b1t), full(a1t), full(M2), full(b2t)]
    if use_shortcut_conv:
        ws_mat = np.asarray(params["ws"], np.float32).reshape(C2, C0)
        Msc = jnp.asarray(np.kron(np.eye(W, dtype=np.float32), ws_mat.T))   # (W*C0, W*C2)
        bsct = jnp.tile(jnp.asarray(params["bs"], jnp.float32), W).reshape(1, W * C2)
        operands += [Msc, bsct]; in_specs += [full(Msc), full(bsct)]

    kernel = functools.partial(_basic_kernel,
                               use_prelu0=use_prelu0,
                               use_shortcut_conv=use_shortcut_conv)

    out2d = pl.pallas_call(
        kernel,
        out_shape=jax.ShapeDtypeStruct((N * H, W * C2), jnp.float32),
        grid_spec=pltpu.PrefetchScalarGridSpec(
            num_scalar_prefetch=0,
            grid=(N // B_T,),
            in_specs=in_specs,
            out_specs=pl.BlockSpec((R, W * C2), lambda i: (i, 0)),
            scratch_shapes=[
                pltpu.VMEM((R + 2, W * C0), jnp.float32),   # padded slab, conv1 input
                pltpu.VMEM((R + 2, W * C1), jnp.float32),   # padded slab, conv2 input
            ],
        ),
        compiler_params=pltpu.CompilerParams(
            dimension_semantics=("parallel",),
            vmem_limit_bytes=64 * 1024 * 1024,
        ),
    )(*operands)

    return out2d.reshape(N, H, W, C2).transpose(0, 3, 1, 2)   # back to NCHW


def reference_forward(x, params, str_type):
    """Pure-JAX reference matching the PyTorch `Basic` module."""
    def prelu(v, alpha):
        return jnp.where(v >= 0, v, alpha.reshape(1, -1, 1, 1) * v)

    def conv(v, w, b):
        return lax.conv_general_dilated(
            v, w, (1, 1), "SAME",
            dimension_numbers=("NCHW", "OIHW", "NCHW")) + b.reshape(1, -1, 1, 1)

    y = x
    if str_type == "relu-conv-relu-conv":
        y = prelu(y, params["a0"])
    y = conv(y, params["w1"], params["b1"])
    y = prelu(y, params["a1"])
    y = conv(y, params["w2"], params["b2"])
    C0, C2 = x.shape[1], params["w2"].shape[0]
    if C0 == C2:
        return y + x
    return y + conv(x, params["ws"], params["bs"])


if __name__ == "__main__":
    key = jax.random.PRNGKey(0)
    N, H, W = 2, 16, 16

    def make_params(k, C0, C1, C2, with_prelu0, with_shortcut):
        ks = jax.random.split(k, 9)
        p = {
            "w1": jax.random.normal(ks[0], (C1, C0, 3, 3), jnp.float32) * 0.1,
            "b1": jax.random.normal(ks[1], (C1,), jnp.float32) * 0.1,
            "w2": jax.random.normal(ks[2], (C2, C1, 3, 3), jnp.float32) * 0.1,
            "b2": jax.random.normal(ks[3], (C2,), jnp.float32) * 0.1,
            "a1": 0.25 + 0.05 * jax.random.normal(ks[4], (C1,), jnp.float32),
        }
        if with_prelu0:
            p["a0"] = 0.25 + 0.05 * jax.random.normal(ks[5], (C0,), jnp.float32)
        if with_shortcut:
            p["ws"] = jax.random.normal(ks[6], (C2, C0, 1, 1), jnp.float32) * 0.1
            p["bs"] = jax.random.normal(ks[7], (C2,), jnp.float32) * 0.1
        return p

    k1, k2, kx1, kx2 = jax.random.split(key, 4)

    # Case 1: 'relu-conv-relu-conv', C0 == C2 -> identity residual.
    C = (8, 16, 8)
    x1 = jax.random.normal(kx1, (N, C[0], H, W), jnp.float32)
    p1 = make_params(k1, *C, with_prelu0=True, with_shortcut=False)
    out1 = jax.block_until_ready(basic_forward(x1, p1, "relu-conv-relu-conv"))
    ref1 = reference_forward(x1, p1, "relu-conv-relu-conv")
    assert out1.shape == (N, C[2], H, W), out1.shape
    np.testing.assert_allclose(np.asarray(out1), np.asarray(ref1), rtol=1e-4, atol=1e-4)

    # Case 2: 'conv-relu-conv', C0 != C2 -> 1x1 conv shortcut.
    C = (8, 16, 16)
    x2 = jax.random.normal(kx2, (N, C[0], H, W), jnp.float32)
    p2 = make_params(k2, *C, with_prelu0=False, with_shortcut=True)
    out2 = jax.block_until_ready(basic_forward(x2, p2, "conv-relu-conv"))
    ref2 = reference_forward(x2, p2, "conv-relu-conv")
    assert out2.shape == (N, C[2], H, W), out2.shape
    np.testing.assert_allclose(np.asarray(out2), np.asarray(ref2), rtol=1e-4, atol=1e-4)

    print("KERNEL_OK")
</pallas_src>

<mosaic_0001>
module attributes {stable_mosaic.version = 11 : i64} {
  func.func @_basic_kernel(%arg0: i32, %arg1: memref<32x128xf32, #tpu.memory_space<vmem>>, %arg2: memref<32x1xf32, #tpu.memory_space<vmem>>, %arg3: memref<32x1xf32, #tpu.memory_space<vmem>>, %arg4: memref<1x128xf32, #tpu.memory_space<vmem>>, %arg5: memref<3x128x256xf32, #tpu.memory_space<vmem>>, %arg6: memref<1x256xf32, #tpu.memory_space<vmem>>, %arg7: memref<1x256xf32, #tpu.memory_space<vmem>>, %arg8: memref<3x256x128xf32, #tpu.memory_space<vmem>>, %arg9: memref<1x128xf32, #tpu.memory_space<vmem>>, %arg10: memref<32x128xf32, #tpu.memory_space<vmem>>, %arg11: memref<34x128xf32, #tpu.memory_space<vmem>>, %arg12: memref<34x256xf32, #tpu.memory_space<vmem>>) attributes {dimension_semantics = [#tpu.dimension_semantics<parallel>], iteration_bounds = array<i64: 1>, scalar_prefetch = 0 : i64, scratch_operands = 2 : i64, tpu.core_type = #tpu.core_type<tc>, window_params = [{transform_indices = @transform_0, window_bounds = array<i64: 32, 128>}, {pipeline_mode = #tpu.pipeline_mode<synchronous>, transform_indices = @transform_1, window_bounds = array<i64: 32, 1>}, {pipeline_mode = #tpu.pipeline_mode<synchronous>, transform_indices = @transform_2, window_bounds = array<i64: 32, 1>}, {pipeline_mode = #tpu.pipeline_mode<synchronous>, transform_indices = @transform_3, window_bounds = array<i64: 1, 128>}, {pipeline_mode = #tpu.pipeline_mode<synchronous>, transform_indices = @transform_4, window_bounds = array<i64: 3, 128, 256>}, {pipeline_mode = #tpu.pipeline_mode<synchronous>, transform_indices = @transform_5, window_bounds = array<i64: 1, 256>}, {pipeline_mode = #tpu.pipeline_mode<synchronous>, transform_indices = @transform_6, window_bounds = array<i64: 1, 256>}, {pipeline_mode = #tpu.pipeline_mode<synchronous>, transform_indices = @transform_7, window_bounds = array<i64: 3, 256, 128>}, {pipeline_mode = #tpu.pipeline_mode<synchronous>, transform_indices = @transform_8, window_bounds = array<i64: 1, 128>}, {transform_indices = @transform_9, window_bounds = array<i64: 32, 128>}]} {
    %c0 = arith.constant 0 : index
    %c0_0 = arith.constant 0 : index
    %0 = vector.load %arg1[%c0, %c0_0] : memref<32x128xf32, #tpu.memory_space<vmem>>, vector<32x128xf32>
    %c0_1 = arith.constant 0 : index
    %c0_2 = arith.constant 0 : index
    %1 = vector.load %arg2[%c0_1, %c0_2] : memref<32x1xf32, #tpu.memory_space<vmem>>, vector<32x1xf32>
    %c0_3 = arith.constant 0 : index
    %c0_4 = arith.constant 0 : index
    %2 = vector.load %arg3[%c0_3, %c0_4] : memref<32x1xf32, #tpu.memory_space<vmem>>, vector<32x1xf32>
    %cst = arith.constant 0.000000e+00 : f32
    %3 = vector.broadcast %cst : f32 to vector<32x128xf32>
    %4 = arith.cmpf oge, %0, %3 : vector<32x128xf32>
    %c0_5 = arith.constant 0 : index
    %c0_6 = arith.constant 0 : index
    %5 = vector.load %arg4[%c0_5, %c0_6] : memref<1x128xf32, #tpu.memory_space<vmem>>, vector<1x128xf32>
    %6 = vector.broadcast %5 : vector<1x128xf32> to vector<32x128xf32>
    %7 = arith.mulf %6, %0 : vector<32x128xf32>
    %8 = arith.select %4, %0, %7 : vector<32x128xi1>, vector<32x128xf32>
    %cst_7 = arith.constant 0.000000e+00 : f32
    %9 = vector.broadcast %cst_7 : f32 to vector<1x128xf32>
    %c0_8 = arith.constant 0 : index
    %c0_9 = arith.constant 0 : index
    %10 = vector.load %arg11[%c0_8, %c0_9] : memref<34x128xf32, #tpu.memory_space<vmem>>, vector<1x128xf32>
    tpu.vector_store %arg11[%c0_8, %c0_9], %9 {strides = array<i32>} : memref<34x128xf32, #tpu.memory_space<vmem>>, vector<1x128xf32>,
    %c33 = arith.constant 33 : index
    %c0_10 = arith.constant 0 : index
    %11 = vector.load %arg11[%c33, %c0_10] : memref<34x128xf32, #tpu.memory_space<vmem>>, vector<1x128xf32>
    tpu.vector_store %arg11[%c33, %c0_10], %9 {strides = array<i32>} : memref<34x128xf32, #tpu.memory_space<vmem>>, vector<1x128xf32>,
    %c1 = arith.constant 1 : index
    %c0_11 = arith.constant 0 : index
    %12 = vector.load %arg11[%c1, %c0_11] : memref<34x128xf32, #tpu.memory_space<vmem>>, vector<32x128xf32>
    tpu.vector_store %arg11[%c1, %c0_11], %8 {strides = array<i32>} : memref<34x128xf32, #tpu.memory_space<vmem>>, vector<32x128xf32>,
    %c0_12 = arith.constant 0 : index
    %c0_13 = arith.constant 0 : index
    %13 = vector.load %arg11[%c0_12, %c0_13] : memref<34x128xf32, #tpu.memory_space<vmem>>, vector<32x128xf32>
    %14 = vector.broadcast %1 : vector<32x1xf32> to vector<32x128xf32>
    %15 = arith.mulf %13, %14 : vector<32x128xf32>
    %c2 = arith.constant 2 : index
    %c0_14 = arith.constant 0 : index
    %16 = vector.load %arg11[%c2, %c0_14] : memref<34x128xf32, #tpu.memory_space<vmem>>, vector<32x128xf32>
    %17 = vector.broadcast %2 : vector<32x1xf32> to vector<32x128xf32>
    %18 = arith.mulf %16, %17 : vector<32x128xf32>
    %c1_15 = arith.constant 1 : index
    %c0_16 = arith.constant 0 : index
    %c0_17 = arith.constant 0 : index
    %19 = vector.load %arg5[%c1_15, %c0_16, %c0_17] : memref<3x128x256xf32, #tpu.memory_space<vmem>>, vector<1x128x256xf32>
    %20 = vector.shape_cast %19 : vector<1x128x256xf32> to vector<128x256xf32>
    %cst_18 = arith.constant dense<0.000000e+00> : vector<32x256xf32>
    %21 = tpu.matmul %8, %20, %cst_18 {dimension_numbers = #tpu.dot_dimension_numbers<[1], [0], [0], [1], [0, 0, 1, 1], [], []>} : vector<32x128xf32>, vector<128x256xf32>, vector<32x256xf32> -> vector<32x256xf32>
    %c0_19 = arith.constant 0 : index
    %c0_20 = arith.constant 0 : index
    %c0_21 = arith.constant 0 : index
    %22 = vector.load %arg5[%c0_19, %c0_20, %c0_21] : memref<3x128x256xf32, #tpu.memory_space<vmem>>, vector<1x128x256xf32>
    %23 = vector.shape_cast %22 : vector<1x128x256xf32> to vector<128x256xf32>
    %cst_22 = arith.constant dense<0.000000e+00> : vector<32x256xf32>
    %24 = tpu.matmul %15, %23, %cst_22 {dimension_numbers = #tpu.dot_dimension_numbers<[1], [0], [0], [1], [0, 0, 1, 1], [], []>} : vector<32x128xf32>, vector<128x256xf32>, vector<32x256xf32> -> vector<32x256xf32>
    %25 = arith.addf %21, %24 : vector<32x256xf32>
    %c2_23 = arith.constant 2 : index
    %c0_24 = arith.constant 0 : index
    %c0_25 = arith.constant 0 : index
    %26 = vector.load %arg5[%c2_23, %c0_24, %c0_25] : memref<3x128x256xf32, #tpu.memory_space<vmem>>, vector<1x128x256xf32>
    %27 = vector.shape_cast %26 : vector<1x128x256xf32> to vector<128x256xf32>
    %cst_26 = arith.constant dense<0.000000e+00> : vector<32x256xf32>
    %28 = tpu.matmul %18, %27, %cst_26 {dimension_numbers = #tpu.dot_dimension_numbers<[1], [0], [0], [1], [0, 0, 1, 1], [], []>} : vector<32x128xf32>, vector<128x256xf32>, vector<32x256xf32> -> vector<32x256xf32>
    %29 = arith.addf %25, %28 : vector<32x256xf32>
    %c0_27 = arith.constant 0 : index
    %c0_28 = arith.constant 0 : index
    %30 = vector.load %arg6[%c0_27, %c0_28] : memref<1x256xf32, #tpu.memory_space<vmem>>, vector<1x256xf32>
    %31 = vector.broadcast %30 : vector<1x256xf32> to vector<32x256xf32>
    %32 = arith.addf %29, %31 : vector<32x256xf32>
    %cst_29 = arith.constant 0.000000e+00 : f32
    %33 = vector.broadcast %cst_29 : f32 to vector<32x256xf32>
    %34 = arith.cmpf oge, %32, %33 : vector<32x256xf32>
    %c0_30 = arith.constant 0 : index
    %c0_31 = arith.constant 0 : index
    %35 = vector.load %arg7[%c0_30, %c0_31] : memref<1x256xf32, #tpu.memory_space<vmem>>, vector<1x256xf32>
    %36 = vector.broadcast %35 : vector<1x256xf32> to vector<32x256xf32>
    %37 = arith.mulf %36, %32 : vector<32x256xf32>
    %38 = arith.select %34, %32, %37 : vector<32x256xi1>, vector<32x256xf32>
    %cst_32 = arith.constant 0.000000e+00 : f32
    %39 = vector.broadcast %cst_32 : f32 to vector<1x256xf32>
    %c0_33 = arith.constant 0 : index
    %c0_34 = arith.constant 0 : index
    %40 = vector.load %arg12[%c0_33, %c0_34] : memref<34x256xf32, #tpu.memory_space<vmem>>, vector<1x256xf32>
    tpu.vector_store %arg12[%c0_33, %c0_34], %39 {strides = array<i32>} : memref<34x256xf32, #tpu.memory_space<vmem>>, vector<1x256xf32>,
    %c33_35 = arith.constant 33 : index
    %c0_36 = arith.constant 0 : index
    %41 = vector.load %arg12[%c33_35, %c0_36] : memref<34x256xf32, #tpu.memory_space<vmem>>, vector<1x256xf32>
    tpu.vector_store %arg12[%c33_35, %c0_36], %39 {strides = array<i32>} : memref<34x256xf32, #tpu.memory_space<vmem>>, vector<1x256xf32>,
    %c1_37 = arith.constant 1 : index
    %c0_38 = arith.constant 0 : index
    %42 = vector.load %arg12[%c1_37, %c0_38] : memref<34x256xf32, #tpu.memory_space<vmem>>, vector<32x256xf32>
    tpu.vector_store %arg12[%c1_37, %c0_38], %38 {strides = array<i32>} : memref<34x256xf32, #tpu.memory_space<vmem>>, vector<32x256xf32>,
    %c0_39 = arith.constant 0 : index
    %c0_40 = arith.constant 0 : index
    %43 = vector.load %arg12[%c0_39, %c0_40] : memref<34x256xf32, #tpu.memory_space<vmem>>, vector<32x256xf32>
    %44 = vector.broadcast %1 : vector<32x1xf32> to vector<32x256xf32>
    %45 = arith.mulf %43, %44 : vector<32x256xf32>
    %c2_41 = arith.constant 2 : index
    %c0_42 = arith.constant 0 : index
    %46 = vector.load %arg12[%c2_41, %c0_42] : memref<34x256xf32, #tpu.memory_space<vmem>>, vector<32x256xf32>
    %47 = vector.broadcast %2 : vector<32x1xf32> to vector<32x256xf32>
    %48 = arith.mulf %46, %47 : vector<32x256xf32>
    %c1_43 = arith.constant 1 : index
    %c0_44 = arith.constant 0 : index
    %c0_45 = arith.constant 0 : index
    %49 = vector.load %arg8[%c1_43, %c0_44, %c0_45] : memref<3x256x128xf32, #tpu.memory_space<vmem>>, vector<1x256x128xf32>
    %50 = vector.shape_cast %49 : vector<1x256x128xf32> to vector<256x128xf32>
    %cst_46 = arith.constant dense<0.000000e+00> : vector<32x128xf32>
    %51 = tpu.matmul %38, %50, %cst_46 {dimension_numbers = #tpu.dot_dimension_numbers<[1], [0], [0], [1], [0, 0, 1, 1], [], []>} : vector<32x256xf32>, vector<256x128xf32>, vector<32x128xf32> -> vector<32x128xf32>
    %c0_47 = arith.constant 0 : index
    %c0_48 = arith.constant 0 : index
    %c0_49 = arith.constant 0 : index
    %52 = vector.load %arg8[%c0_47, %c0_48, %c0_49] : memref<3x256x128xf32, #tpu.memory_space<vmem>>, vector<1x256x128xf32>
    %53 = vector.shape_cast %52 : vector<1x256x128xf32> to vector<256x128xf32>
    %cst_50 = arith.constant dense<0.000000e+00> : vector<32x128xf32>
    %54 = tpu.matmul %45, %53, %cst_50 {dimension_numbers = #tpu.dot_dimension_numbers<[1], [0], [0], [1], [0, 0, 1, 1], [], []>} : vector<32x256xf32>, vector<256x128xf32>, vector<32x128xf32> -> vector<32x128xf32>
    %55 = arith.addf %51, %54 : vector<32x128xf32>
    %c2_51 = arith.constant 2 : index
    %c0_52 = arith.constant 0 : index
    %c0_53 = arith.constant 0 : index
    %56 = vector.load %arg8[%c2_51, %c0_52, %c0_53] : memref<3x256x128xf32, #tpu.memory_space<vmem>>, vector<1x256x128xf32>
    %57 = vector.shape_cast %56 : vector<1x256x128xf32> to vector<256x128xf32>
    %cst_54 = arith.constant dense<0.000000e+00> : vector<32x128xf32>
    %58 = tpu.matmul %48, %57, %cst_54 {dimension_numbers = #tpu.dot_dimension_numbers<[1], [0], [0], [1], [0, 0, 1, 1], [], []>} : vector<32x256xf32>, vector<256x128xf32>, vector<32x128xf32> -> vector<32x128xf32>
    %59 = arith.addf %55, %58 : vector<32x128xf32>
    %c0_55 = arith.constant 0 : index
    %c0_56 = arith.constant 0 : index
    %60 = vector.load %arg9[%c0_55, %c0_56] : memref<1x128xf32, #tpu.memory_space<vmem>>, vector<1x128xf32>
    %61 = vector.broadcast %60 : vector<1x128xf32> to vector<32x128xf32>
    %62 = arith.addf %59, %61 : vector<32x128xf32>
    %63 = arith.addf %62, %0 : vector<32x128xf32>
    %c0_57 = arith.constant 0 : index
    %c0_58 = arith.constant 0 : index
    %64 = vector.load %arg10[%c0_57, %c0_58] : memref<32x128xf32, #tpu.memory_space<vmem>>, vector<32x128xf32>
    tpu.vector_store %arg10[%c0_57, %c0_58], %63 {strides = array<i32>} : memref<32x128xf32, #tpu.memory_space<vmem>>, vector<32x128xf32>,
    return
  }
  func.func @transform_0(%arg0: i32) -> (i32, i32) {
    %c0_i32 = arith.constant 0 : i32
    %c0_i32_0 = arith.constant 0 : i32
    return %arg0, %c0_i32 : i32, i32
  }
  func.func @transform_1(%arg0: i32) -> (i32, i32) {
    %c0_i32 = arith.constant 0 : i32
    %c0_i32_0 = arith.constant 0 : i32
    %c0_i32_1 = arith.constant 0 : i32
    return %c0_i32, %c0_i32_0 : i32, i32
  }
  func.func @transform_2(%arg0: i32) -> (i32, i32) {
    %c0_i32 = arith.constant 0 : i32
    %c0_i32_0 = arith.constant 0 : i32
    %c0_i32_1 = arith.constant 0 : i32
    return %c0_i32, %c0_i32_0 : i32, i32
  }
  func.func @transform_3(%arg0: i32) -> (i32, i32) {
    %c0_i32 = arith.constant 0 : i32
    %c0_i32_0 = arith.constant 0 : i32
    %c0_i32_1 = arith.constant 0 : i32
    return %c0_i32, %c0_i32_0 : i32, i32
  }
  func.func @transform_4(%arg0: i32) -> (i32, i32, i32) {
    %c0_i32 = arith.constant 0 : i32
    %c0_i32_0 = arith.constant 0 : i32
    %c0_i32_1 = arith.constant 0 : i32
    %c0_i32_2 = arith.constant 0 : i32
    return %c0_i32, %c0_i32_0, %c0_i32_1 : i32, i32, i32
  }
  func.func @transform_5(%arg0: i32) -> (i32, i32) {
    %c0_i32 = arith.constant 0 : i32
    %c0_i32_0 = arith.constant 0 : i32
    %c0_i32_1 = arith.constant 0 : i32
    return %c0_i32, %c0_i32_0 : i32, i32
  }
  func.func @transform_6(%arg0: i32) -> (i32, i32) {
    %c0_i32 = arith.constant 0 : i32
    %c0_i32_0 = arith.constant 0 : i32
    %c0_i32_1 = arith.constant 0 : i32
    return %c0_i32, %c0_i32_0 : i32, i32
  }
  func.func @transform_7(%arg0: i32) -> (i32, i32, i32) {
    %c0_i32 = arith.constant 0 : i32
    %c0_i32_0 = arith.constant 0 : i32
    %c0_i32_1 = arith.constant 0 : i32
    %c0_i32_2 = arith.constant 0 : i32
    return %c0_i32, %c0_i32_0, %c0_i32_1 : i32, i32, i32
  }
  func.func @transform_8(%arg0: i32) -> (i32, i32) {
    %c0_i32 = arith.constant 0 : i32
    %c0_i32_0 = arith.constant 0 : i32
    %c0_i32_1 = arith.constant 0 : i32
    return %c0_i32, %c0_i32_0 : i32, i32
  }
  func.func @transform_9(%arg0: i32) -> (i32, i32) {
    %c0_i32 = arith.constant 0 : i32
    %c0_i32_0 = arith.constant 0 : i32
    return %arg0, %c0_i32 : i32, i32
  }
}

</mosaic_0001>

<llo_original>
// kernel: tpu_custom_call.1
$region0: #{tpu_custom_call.1}
  #allocation0 [shape = 'u32[]', space=smem, size = 0x4, offset = 0x4, fixed_abs, tag = 'smem constant byte address 0x4 - core index']
  #allocation1 [shape = 'u32[144,128]{1,0:T(1,128)}', space=vmem, size = 0x12000, scoped, tag = 'internal scratch']
  #allocation2 [shape = 'f32[34,128]{1,0:T(8,128)}', space=vmem, size = 0x5000, scoped, tag = 'scratch operand']
  #allocation3 [shape = 'f32[34,256]{1,0:T(8,128)}', space=vmem, size = 0xa000, scoped, tag = 'scratch operand']
  %s0 = inlined_call_operand.hbm [shape: f32[32,128], index: 0, kind: input, shape index: {}]
  %s1 = inlined_call_operand.hbm [shape: f32[32,1], index: 1, kind: input, shape index: {}]
  %s2 = inlined_call_operand.hbm [shape: f32[32,1], index: 2, kind: input, shape index: {}]
  %s3 = inlined_call_operand.hbm [shape: f32[1,128], index: 3, kind: input, shape index: {}]
  %s4 = inlined_call_operand.hbm [shape: f32[3,128,256], index: 4, kind: input, shape index: {}]
  %s5 = inlined_call_operand.hbm [shape: f32[1,256], index: 5, kind: input, shape index: {}]
  %s6 = inlined_call_operand.hbm [shape: f32[1,256], index: 6, kind: input, shape index: {}]
  %s7 = inlined_call_operand.hbm [shape: f32[3,256,128], index: 7, kind: input, shape index: {}]
  %s8 = inlined_call_operand.hbm [shape: f32[1,128], index: 8, kind: input, shape index: {}]
  %s9 = inlined_call_operand.hbm [shape: f32[32,128], index: 9, kind: output, shape index: {}]
  %s10 = sld [smem:[#allocation0]]
  $region82: #{tpu_custom_call.1} parent=0
    _
  %s12 = ssub.s32 1, %s10
  %s13 = scalar_select 0, %s12, %s10
  $region1: #{tpu_custom_call.1} parent=0
    #allocation4 [shape = 'u8[16384]{0}', space=vmem, size = 0x4000, scoped, tag = 'input window, operand 0, single buffered']
    #allocation5 [shape = 's32[1]{0}', space=sflag, size = 0x4, scoped, tag = 'scoped memory for tpu_custom_call.1']
    #allocation6 [shape = 's32[1]{0}', space=sflag, size = 0x4, scoped, tag = 'scoped memory for tpu_custom_call.1']
    #allocation7 [shape = 'u8[16384]{0}', space=vmem, size = 0x4000, scoped, tag = 'input window, operand 1, single buffered']
    #allocation8 [shape = 's32[1]{0}', space=sflag, size = 0x4, scoped, tag = 'scoped memory for tpu_custom_call.1']
    #allocation9 [shape = 'u8[16384]{0}', space=vmem, size = 0x4000, scoped, tag = 'input window, operand 2, single buffered']
    #allocation10 [shape = 'u8[512]{0}', space=vmem, size = 0x400, scoped, tag = 'input window, operand 3, single buffered']
    #allocation11 [shape = 's32[1]{0}', space=sflag, size = 0x4, scoped, tag = 'scoped memory for tpu_custom_call.1']
    #allocation12 [shape = 'u8[393216]{0}', space=vmem, size = 0x60000, scoped, tag = 'input window, operand 4, single buffered']
    #allocation13 [shape = 'u8[1024]{0}', space=vmem, size = 0x400, scoped, tag = 'input window, operand 5, single buffered']
    #allocation14 [shape = 's32[1]{0}', space=sflag, size = 0x4, scoped, tag = 'scoped memory for tpu_custom_call.1']
    #allocation15 [shape = 'u8[1024]{0}', space=vmem, size = 0x400, scoped, tag = 'input window, operand 6, single buffered']
    #allocation16 [shape = 'u8[393216]{0}', space=vmem, size = 0x60000, scoped, tag = 'input window, operand 7, single buffered']
    #allocation17 [shape = 's32[1]{0}', space=sflag, size = 0x4, scoped, tag = 'scoped memory for tpu_custom_call.1']
    #allocation18 [shape = 'u8[512]{0}', space=vmem, size = 0x400, scoped, tag = 'input window, operand 8, single buffered']
    #allocation19 [shape = 'u8[16384]{0}', space=vmem, size = 0x4000, scoped, tag = 'output window, operand 0, single buffered']
    %14 = vsyncpa [#allocation5], 0
    %15 = vsyncpa [#allocation8], 0
    %16 = vsyncpa [#allocation11], 0
    %17 = vsyncpa [#allocation14], 0
    %18 = vsyncpa [#allocation17], 0
    %19 = vsyncpa [#allocation6], 0
    // Predicated region
    $region2: #{tpu_custom_call.1} parent=1 // pred_check
      _
    $region3: #{tpu_custom_call.1} parent=1 // pred_check_branch
      %21 = sbr.rel (0) target = $region5
    $region4: #{tpu_custom_call.1} parent=1 // pred_region
      %s23 = ssub.s32 512, 512
      %24 = vsyncadd [#allocation5], %s23
      %s25 = sshll.u32 [#allocation4], 4
      %s26 = int_to_ptr.vmem [resolvable:$true] %s25
      %31 = dma.hbm_to_vmem [thread:$0]  %s0, 512, %s26, [#allocation5], 128, 128, 8
    $region5: #{tpu_custom_call.1} parent=1 // pred_fallthru
      _
    // Predicated region
    $region6: #{tpu_custom_call.1} parent=1 // pred_check
      _
    $region7: #{tpu_custom_call.1} parent=1 // pred_check_branch
      %33 = sbr.rel (0) target = $region9
    $region8: #{tpu_custom_call.1} parent=1 // pred_region
      %s35 = ssub.s32 512, 512
      %36 = vsyncadd [#allocation8], %s35
      %s37 = sshll.u32 [#allocation7], 4
      %s38 = int_to_ptr.vmem [resolvable:$true] %s37
      %43 = dma.hbm_to_vmem [thread:$0]  %s1, 512, %s38, [#allocation8], 128, 128, 8
    $region9: #{tpu_custom_call.1} parent=1 // pred_fallthru
      _
    // Predicated region
    $region10: #{tpu_custom_call.1} parent=1 // pred_check
      _
    $region11: #{tpu_custom_call.1} parent=1 // pred_check_branch
      %45 = sbr.rel (0) target = $region13
    $region12: #{tpu_custom_call.1} parent=1 // pred_region
      %s47 = ssub.s32 512, 512
      %48 = vsyncadd [#allocation8], %s47
      %s49 = sshll.u32 [#allocation9], 4
      %s50 = int_to_ptr.vmem [resolvable:$true] %s49
      %55 = dma.hbm_to_vmem [thread:$0]  %s2, 512, %s50, [#allocation8], 128, 128, 8
    $region13: #{tpu_custom_call.1} parent=1 // pred_fallthru
      _
    // Predicated region
    $region14: #{tpu_custom_call.1} parent=1 // pred_check
      _
    $region15: #{tpu_custom_call.1} parent=1 // pred_check_branch
      %57 = sbr.rel (0) target = $region17
    $region16: #{tpu_custom_call.1} parent=1 // pred_region
      %s59 = ssub.s32 16, 16
      %60 = vsyncadd [#allocation11], %s59
      %s62 = sshll.u32 [#allocation10], 4
      %s63 = int_to_ptr.vmem [resolvable:$true] %s62
      %65 = dma.hbm_to_vmem [thread:$0]  %s3, 16, %s63, [#allocation11]
    $region17: #{tpu_custom_call.1} parent=1 // pred_fallthru
      _
    // Predicated region
    $region18: #{tpu_custom_call.1} parent=1 // pred_check
      _
    $region19: #{tpu_custom_call.1} parent=1 // pred_check_branch
      %67 = sbr.rel (0) target = $region21
    $region20: #{tpu_custom_call.1} parent=1 // pred_region
      %s69 = ssub.s32 12288, 12288
      %70 = vsyncadd [#allocation11], %s69
      %s71 = sshll.u32 [#allocation12], 4
      %s72 = int_to_ptr.vmem [resolvable:$true] %s71
      %77 = dma.hbm_to_vmem [thread:$0]  %s4, 12288, %s72, [#allocation11], 256, 256, 16
    $region21: #{tpu_custom_call.1} parent=1 // pred_fallthru
      _
    // Predicated region
    $region22: #{tpu_custom_call.1} parent=1 // pred_check
      _
    $region23: #{tpu_custom_call.1} parent=1 // pred_check_branch
      %79 = sbr.rel (0) target = $region25
    $region24: #{tpu_custom_call.1} parent=1 // pred_region
      %s81 = ssub.s32 32, 32
      %82 = vsyncadd [#allocation14], %s81
      %s84 = sshll.u32 [#allocation13], 4
      %s85 = int_to_ptr.vmem [resolvable:$true] %s84
      %87 = dma.hbm_to_vmem [thread:$0]  %s5, 32, %s85, [#allocation14]
    $region25: #{tpu_custom_call.1} parent=1 // pred_fallthru
      _
    // Predicated region
    $region26: #{tpu_custom_call.1} parent=1 // pred_check
      _
    $region27: #{tpu_custom_call.1} parent=1 // pred_check_branch
      %89 = sbr.rel (0) target = $region29
    $region28: #{tpu_custom_call.1} parent=1 // pred_region
      %s91 = ssub.s32 32, 32
      %92 = vsyncadd [#allocation14], %s91
      %s94 = sshll.u32 [#allocation15], 4
      %s95 = int_to_ptr.vmem [resolvable:$true] %s94
      %97 = dma.hbm_to_vmem [thread:$0]  %s6, 32, %s95, [#allocation14]
    $region29: #{tpu_custom_call.1} parent=1 // pred_fallthru
      _
    // Predicated region
    $region30: #{tpu_custom_call.1} parent=1 // pred_check
      _
    $region31: #{tpu_custom_call.1} parent=1 // pred_check_branch
      %99 = sbr.rel (0) target = $region33
    $region32: #{tpu_custom_call.1} parent=1 // pred_region
      %s101 = ssub.s32 12288, 12288
      %102 = vsyncadd [#allocation17], %s101
      %s103 = sshll.u32 [#allocation16], 4
      %s104 = int_to_ptr.vmem [resolvable:$true] %s103
      %109 = dma.hbm_to_vmem [thread:$0]  %s7, 12288, %s104, [#allocation17], 128, 128, 8
    $region33: #{tpu_custom_call.1} parent=1 // pred_fallthru
      _
    // Predicated region
    $region34: #{tpu_custom_call.1} parent=1 // pred_check
      _
    $region35: #{tpu_custom_call.1} parent=1 // pred_check_branch
      %111 = sbr.rel (0) target = $region37
    $region36: #{tpu_custom_call.1} parent=1 // pred_region
      %s113 = ssub.s32 16, 16
      %114 = vsyncadd [#allocation17], %s113
      %s116 = sshll.u32 [#allocation18], 4
      %s117 = int_to_ptr.vmem [resolvable:$true] %s116
      %119 = dma.hbm_to_vmem [thread:$0]  %s8, 16, %s117, [#allocation17]
    $region37: #{tpu_custom_call.1} parent=1 // pred_fallthru
      _
    // Predicated region
    $region38: #{tpu_custom_call.1} parent=1 // pred_check
      _
    $region39: #{tpu_custom_call.1} parent=1 // pred_check_branch
      %121 = sbr.rel (0) target = $region41
    $region40: #{tpu_custom_call.1} parent=1 // pred_region
      %122 = dma.done [#allocation5], 512
    $region41: #{tpu_custom_call.1} parent=1 // pred_fallthru
      _
    // Predicated region
    $region42: #{tpu_custom_call.1} parent=1 // pred_check
      _
    $region43: #{tpu_custom_call.1} parent=1 // pred_check_branch
      %124 = sbr.rel (0) target = $region45
    $region44: #{tpu_custom_call.1} parent=1 // pred_region
      %125 = dma.done [#allocation8], 512
    $region45: #{tpu_custom_call.1} parent=1 // pred_fallthru
      _
    // Predicated region
    $region46: #{tpu_custom_call.1} parent=1 // pred_check
      _
    $region47: #{tpu_custom_call.1} parent=1 // pred_check_branch
      %127 = sbr.rel (0) target = $region49
    $region48: #{tpu_custom_call.1} parent=1 // pred_region
      %128 = dma.done [#allocation8], 512
    $region49: #{tpu_custom_call.1} parent=1 // pred_fallthru
      _
    // Predicated region
    $region50: #{tpu_custom_call.1} parent=1 // pred_check
      _
    $region51: #{tpu_custom_call.1} parent=1 // pred_check_branch
      %130 = sbr.rel (0) target = $region53
    $region52: #{tpu_custom_call.1} parent=1 // pred_region
      %131 = dma.done [#allocation11], 16
    $region53: #{tpu_custom_call.1} parent=1 // pred_fallthru
      _
    // Predicated region
    $region54: #{tpu_custom_call.1} parent=1 // pred_check
      _
    $region55: #{tpu_custom_call.1} parent=1 // pred_check_branch
      %133 = sbr.rel (0) target = $region57
    $region56: #{tpu_custom_call.1} parent=1 // pred_region
      %134 = dma.done [#allocation11], 12288
    $region57: #{tpu_custom_call.1} parent=1 // pred_fallthru
      _
    // Predicated region
    $region58: #{tpu_custom_call.1} parent=1 // pred_check
      _
    $region59: #{tpu_custom_call.1} parent=1 // pred_check_branch
      %136 = sbr.rel (0) target = $region61
    $region60: #{tpu_custom_call.1} parent=1 // pred_region
      %137 = dma.done [#allocation14], 32
    $region61: #{tpu_custom_call.1} parent=1 // pred_fallthru
      _
    // Predicated region
    $region62: #{tpu_custom_call.1} parent=1 // pred_check
      _
    $region63: #{tpu_custom_call.1} parent=1 // pred_check_branch
      %139 = sbr.rel (0) target = $region65
    $region64: #{tpu_custom_call.1} parent=1 // pred_region
      %140 = dma.done [#allocation14], 32
    $region65: #{tpu_custom_call.1} parent=1 // pred_fallthru
      _
    // Predicated region
    $region66: #{tpu_custom_call.1} parent=1 // pred_check
      _
    $region67: #{tpu_custom_call.1} parent=1 // pred_check_branch
      %142 = sbr.rel (0) target = $region69
    $region68: #{tpu_custom_call.1} parent=1 // pred_region
      %143 = dma.done [#allocation17], 12288
    $region69: #{tpu_custom_call.1} parent=1 // pred_fallthru
      _
    // Predicated region
    $region70: #{tpu_custom_call.1} parent=1 // pred_check
      _
    $region71: #{tpu_custom_call.1} parent=1 // pred_check_branch
      %145 = sbr.rel (0) target = $region73
    $region72: #{tpu_custom_call.1} parent=1 // pred_region
      %146 = dma.done [#allocation17], 16
    $region73: #{tpu_custom_call.1} parent=1 // pred_fallthru
      _
    %v147 = vld [vmem:[#allocation4] sm:$0xff]
    %v148 = vld [vmem:[#allocation4 + $0x8] sm:$0xff]
    %v149 = vld [vmem:[#allocation4 + $0x10] sm:$0xff]
    %v150 = vld [vmem:[#allocation4 + $0x18] sm:$0xff]
    %v151 = vld [vmem:[#allocation7] sm:$0xff]
    %v152 = vld [vmem:[#allocation7 + $0x8] sm:$0xff]
    %v153 = vld [vmem:[#allocation7 + $0x10] sm:$0xff]
    %v154 = vld [vmem:[#allocation7 + $0x18] sm:$0xff]
    %v155 = vld [vmem:[#allocation9] sm:$0xff]
    %v156 = vld [vmem:[#allocation9 + $0x8] sm:$0xff]
    %v157 = vld [vmem:[#allocation9 + $0x10] sm:$0xff]
    %v158 = vld [vmem:[#allocation9 + $0x18] sm:$0xff]
    %vm159 = vcmp.ge.f32.partialorder %v147, 0.0
    %vm160 = vcmp.ge.f32.partialorder %v148, 0.0
    %vm161 = vcmp.ge.f32.partialorder %v149, 0.0
    %vm162 = vcmp.ge.f32.partialorder %v150, 0.0
    %v163 = vld [vmem:[#allocation10] sm:$0x1]
    %v165 = vlaneseq
    %v166 = vshrl.u32 %v165, 7
    %v167 = vsub.s32 0, %v166
    %v168 = vrot.slane %v163, %v167
    %v170 = vmul.f32 %v168, %v147
    %v171 = vmul.f32 %v168, %v148
    %v172 = vmul.f32 %v168, %v149
    %v173 = vmul.f32 %v168, %v150
    %v174 = vsel %vm159, %v147, %v170
    %v175 = vsel %vm160, %v148, %v171
    %v176 = vsel %vm161, %v149, %v172
    %v177 = vsel %vm162, %v150, %v173
    %178 = vst [vmem:[#allocation2] sm:$0x1] 0.0
    %179 = vst [vmem:[#allocation2 + $0x21] sm:$0x1] 0.0
    %180 = vst [vmem:[#allocation2 + $0x1] sm:$0xff] %v174
    %181 = vst [vmem:[#allocation2 + $0x9] sm:$0xff] %v175
    %182 = vst [vmem:[#allocation2 + $0x11] sm:$0xff] %v176
    %183 = vst [vmem:[#allocation2 + $0x19] sm:$0xff] %v177
    %v184 = vld [vmem:[#allocation2] sm:$0xff]
    %v185 = vld [vmem:[#allocation2 + $0x8] sm:$0xff]
    %v186 = vld [vmem:[#allocation2 + $0x10] sm:$0xff]
    %v187 = vld [vmem:[#allocation2 + $0x18] sm:$0xff]
    %189 = vset.pattern.permute.xlu0 0
    %190 = vperm.xlu0 %189, %v151
    %v191 = vpop.permute.xlu0 %190
    %194 = vset.pattern.permute.xlu0 0
    %195 = vperm.xlu0 %194, %v152
    %v196 = vpop.permute.xlu0 %195
    %199 = vset.pattern.permute.xlu0 0
    %200 = vperm.xlu0 %199, %v153
    %v201 = vpop.permute.xlu0 %200
    %204 = vset.pattern.permute.xlu0 0
    %205 = vperm.xlu0 %204, %v154
    %v206 = vpop.permute.xlu0 %205
    %v208 = vmul.f32 %v184, %v191
    %v209 = vmul.f32 %v185, %v196
    %v210 = vmul.f32 %v186, %v201
    %v211 = vmul.f32 %v187, %v206
    %v212 = vld [vmem:[#allocation2 + $0x2] sm:$0xff]
    %v213 = vld [vmem:[#allocation2 + $0xa] sm:$0xff]
    %v214 = vld [vmem:[#allocation2 + $0x12] sm:$0xff]
    %v215 = vld [vmem:[#allocation2 + $0x1a] sm:$0xff]
    %217 = vset.pattern.permute.xlu0 0
    %218 = vperm.xlu0 %217, %v155
    %v219 = vpop.permute.xlu0 %218
    %222 = vset.pattern.permute.xlu0 0
    %223 = vperm.xlu0 %222, %v156
    %v224 = vpop.permute.xlu0 %223
    %227 = vset.pattern.permute.xlu0 0
    %228 = vperm.xlu0 %227, %v157
    %v229 = vpop.permute.xlu0 %228
    %232 = vset.pattern.permute.xlu0 0
    %233 = vperm.xlu0 %232, %v158
    %v234 = vpop.permute.xlu0 %233
    %v236 = vmul.f32 %v212, %v219
    %v237 = vmul.f32 %v213, %v224
    %v238 = vmul.f32 %v214, %v229
    %v239 = vmul.f32 %v215, %v234
    %s240 = scalar_lea.vmem [#allocation12], 256
    %v241 = vld [vmem:[%s240] sm:$0xff]
    %v242 = vld [vmem:[%s240 + $0x8] sm:$0xff]
    %v243 = vld [vmem:[%s240 + $0x10] sm:$0xff]
    %v244 = vld [vmem:[%s240 + $0x18] sm:$0xff]
    %v245 = vld [vmem:[%s240 + $0x20] sm:$0xff]
    %v246 = vld [vmem:[%s240 + $0x28] sm:$0xff]
    %v247 = vld [vmem:[%s240 + $0x30] sm:$0xff]
    %v248 = vld [vmem:[%s240 + $0x38] sm:$0xff]
    %v249 = vld [vmem:[%s240 + $0x40] sm:$0xff]
    %v250 = vld [vmem:[%s240 + $0x48] sm:$0xff]
    %v251 = vld [vmem:[%s240 + $0x50] sm:$0xff]
    %v252 = vld [vmem:[%s240 + $0x58] sm:$0xff]
    %v253 = vld [vmem:[%s240 + $0x60] sm:$0xff]
    %v254 = vld [vmem:[%s240 + $0x68] sm:$0xff]
    %v255 = vld [vmem:[%s240 + $0x70] sm:$0xff]
    %v256 = vld [vmem:[%s240 + $0x78] sm:$0xff]
    %v257 = vld [vmem:[%s240 + $0x80] sm:$0xff]
    %v258 = vld [vmem:[%s240 + $0x88] sm:$0xff]
    %v259 = vld [vmem:[%s240 + $0x90] sm:$0xff]
    %v260 = vld [vmem:[%s240 + $0x98] sm:$0xff]
    %v261 = vld [vmem:[%s240 + $0xa0] sm:$0xff]
    %v262 = vld [vmem:[%s240 + $0xa8] sm:$0xff]
    %v263 = vld [vmem:[%s240 + $0xb0] sm:$0xff]
    %v264 = vld [vmem:[%s240 + $0xb8] sm:$0xff]
    %v265 = vld [vmem:[%s240 + $0xc0] sm:$0xff]
    %v266 = vld [vmem:[%s240 + $0xc8] sm:$0xff]
    %v267 = vld [vmem:[%s240 + $0xd0] sm:$0xff]
    %v268 = vld [vmem:[%s240 + $0xd8] sm:$0xff]
    %v269 = vld [vmem:[%s240 + $0xe0] sm:$0xff]
    %v270 = vld [vmem:[%s240 + $0xe8] sm:$0xff]
    %v271 = vld [vmem:[%s240 + $0xf0] sm:$0xff]
    %v272 = vld [vmem:[%s240 + $0xf8] sm:$0xff]
    %v273 = vld [vmem:[#allocation12] sm:$0xff]
    %v274 = vld [vmem:[#allocation12 + $0x8] sm:$0xff]
    %v275 = vld [vmem:[#allocation12 + $0x10] sm:$0xff]
    %v276 = vld [vmem:[#allocation12 + $0x18] sm:$0xff]
    %v277 = vld [vmem:[#allocation12 + $0x20] sm:$0xff]
    %v278 = vld [vmem:[#allocation12 + $0x28] sm:$0xff]
    %v279 = vld [vmem:[#allocation12 + $0x30] sm:$0xff]
    %v280 = vld [vmem:[#allocation12 + $0x38] sm:$0xff]
    %v281 = vld [vmem:[#allocation12 + $0x40] sm:$0xff]
    %v282 = vld [vmem:[#allocation12 + $0x48] sm:$0xff]
    %v283 = vld [vmem:[#allocation12 + $0x50] sm:$0xff]
    %v284 = vld [vmem:[#allocation12 + $0x58] sm:$0xff]
    %v285 = vld [vmem:[#allocation12 + $0x60] sm:$0xff]
    %v286 = vld [vmem:[#allocation12 + $0x68] sm:$0xff]
    %v287 = vld [vmem:[#allocation12 + $0x70] sm:$0xff]
    %v288 = vld [vmem:[#allocation12 + $0x78] sm:$0xff]
    %v289 = vld [vmem:[#allocation12 + $0x80] sm:$0xff]
    %v290 = vld [vmem:[#allocation12 + $0x88] sm:$0xff]
    %v291 = vld [vmem:[#allocation12 + $0x90] sm:$0xff]
    %v292 = vld [vmem:[#allocation12 + $0x98] sm:$0xff]
    %v293 = vld [vmem:[#allocation12 + $0xa0] sm:$0xff]
    %v294 = vld [vmem:[#allocation12 + $0xa8] sm:$0xff]
    %v295 = vld [vmem:[#allocation12 + $0xb0] sm:$0xff]
    %v296 = vld [vmem:[#allocation12 + $0xb8] sm:$0xff]
    %v297 = vld [vmem:[#allocation12 + $0xc0] sm:$0xff]
    %v298 = vld [vmem:[#allocation12 + $0xc8] sm:$0xff]
    %v299 = vld [vmem:[#allocation12 + $0xd0] sm:$0xff]
    %v300 = vld [vmem:[#allocation12 + $0xd8] sm:$0xff]
    %v301 = vld [vmem:[#allocation12 + $0xe0] sm:$0xff]
    %v302 = vld [vmem:[#allocation12 + $0xe8] sm:$0xff]
    %v303 = vld [vmem:[#allocation12 + $0xf0] sm:$0xff]
    %v304 = vld [vmem:[#allocation12 + $0xf8] sm:$0xff]
    %305 = vmatprep.subr.mxu0 %v274
    %306 = vmatpush1.msra.mxu0 %v273
    %307 = vmatprep.subr.mxu0 %v276
    %308 = vmatpush1.msra.mxu0 %v275
    %309 = vmatprep.subr.mxu0 %v278
    %310 = vmatpush1.msra.mxu0 %v277
    %311 = vmatprep.subr.mxu0 %v280
    %312 = vmatpush1.msra.mxu0 %v279
    %313 = vmatprep.subr.mxu0 %v282
    %314 = vmatpush1.msra.mxu0 %v281
    %315 = vmatprep.subr.mxu0 %v284
    %316 = vmatpush1.msra.mxu0 %v283
    %317 = vmatprep.subr.mxu0 %v286
    %318 = vmatpush1.msra.mxu0 %v285
    %319 = vmatprep.subr.mxu0 %v288
    %320 = vmatpush1.msra.mxu0 %v287
    %321 = vmatprep.subr.mxu0 %v290
    %322 = vmatpush1.msra.mxu0 %v289
    %323 = vmatprep.subr.mxu0 %v292
    %324 = vmatpush1.msra.mxu0 %v291
    %325 = vmatprep.subr.mxu0 %v294
    %326 = vmatpush1.msra.mxu0 %v293
    %327 = vmatprep.subr.mxu0 %v296
    %328 = vmatpush1.msra.mxu0 %v295
    %329 = vmatprep.subr.mxu0 %v298
    %330 = vmatpush1.msra.mxu0 %v297
    %331 = vmatprep.subr.mxu0 %v300
    %332 = vmatpush1.msra.mxu0 %v299
    %333 = vmatprep.subr.mxu0 %v302
    %334 = vmatpush1.msra.mxu0 %v301
    %335 = vmatprep.subr.mxu0 %v304
    %336 = vmatpush1.msra.mxu0 %v303
    %337 = vmatprep.subr.mxu0 0.0
    %338 = vmatpush1.msra.mxu0 0.0
    %339 = vmatprep.subr.mxu0 0.0
    %340 = vmatpush1.msra.mxu0 0.0
    %341 = vmatprep.subr.mxu0 0.0
    %342 = vmatpush1.msra.mxu0 0.0
    %343 = vmatprep.subr.mxu0 0.0
    %344 = vmatpush1.msra.mxu0 0.0
    %345 = vmatprep.subr.mxu0 0.0
    %346 = vmatpush1.msra.mxu0 0.0
    %347 = vmatprep.subr.mxu0 0.0
    %348 = vmatpush1.msra.mxu0 0.0
    %349 = vmatprep.subr.mxu0 0.0
    %350 = vmatpush1.msra.mxu0 0.0
    %351 = vmatprep.subr.mxu0 0.0
    %352 = vmatpush1.msra.mxu0 0.0
    %353 = vmatprep.subr.mxu0 0.0
    %354 = vmatpush1.msra.mxu0 0.0
    %355 = vmatprep.subr.mxu0 0.0
    %356 = vmatpush1.msra.mxu0 0.0
    %357 = vmatprep.subr.mxu0 0.0
    %358 = vmatpush1.msra.mxu0 0.0
    %359 = vmatprep.subr.mxu0 0.0
    %360 = vmatpush1.msra.mxu0 0.0
    %361 = vmatprep.subr.mxu0 0.0
    %362 = vmatpush1.msra.mxu0 0.0
    %363 = vmatprep.subr.mxu0 0.0
    %364 = vmatpush1.msra.mxu0 0.0
    %365 = vmatprep.subr.mxu0 0.0
    %366 = vmatpush1.msra.mxu0 0.0
    %367 = vmatprep.subr.mxu0 0.0
    %368 = vmatpush1.msra.mxu0 0.0
    %369 = vmatprep.mubr.f32.mxu0 0.0
    %370 = vmatmul.mubr.f32.gmra.mrb[0].mxu0 %v208
    %v371 = vpop.f32.mrb[0].mxu0
    %v372 = vadd.f32 0.0, %v371
    %v373 = vpop.f32.mrb[0].mxu0
    %v374 = vadd.f32 0.0, %v373
    %375 = vmatprep.mubr.f32.mxu0 0.0
    %376 = vmatmul.mubr.f32.gmra.mrb[0].mxu0 %v209
    %v377 = vpop.f32.mrb[0].mxu0
    %v378 = vadd.f32 0.0, %v377
    %v379 = vpop.f32.mrb[0].mxu0
    %v380 = vadd.f32 0.0, %v379
    %381 = vmatprep.mubr.f32.mxu0 0.0
    %382 = vmatmul.mubr.f32.gmra.mrb[0].mxu0 %v210
    %v383 = vpop.f32.mrb[0].mxu0
    %v384 = vadd.f32 0.0, %v383
    %v385 = vpop.f32.mrb[0].mxu0
    %v386 = vadd.f32 0.0, %v385
    %387 = vmatprep.mubr.f32.mxu0 0.0
    %388 = vmatmul.mubr.f32.gmra.mrb[0].mxu0 %v211
    %v389 = vpop.f32.mrb[0].mxu0
    %v390 = vadd.f32 0.0, %v389
    %v391 = vpop.f32.mrb[0].mxu0
    %v392 = vadd.f32 0.0, %v391
    %393 = vdwg.mxu0
    %394 = vmatprep.subr.mxu0 %v242
    %395 = vmatpush1.msra.mxu0 %v241
    %396 = vmatprep.subr.mxu0 %v244
    %397 = vmatpush1.msra.mxu0 %v243
    %398 = vmatprep.subr.mxu0 %v246
    %399 = vmatpush1.msra.mxu0 %v245
    %400 = vmatprep.subr.mxu0 %v248
    %401 = vmatpush1.msra.mxu0 %v247
    %402 = vmatprep.subr.mxu0 %v250
    %403 = vmatpush1.msra.mxu0 %v249
    %404 = vmatprep.subr.mxu0 %v252
    %405 = vmatpush1.msra.mxu0 %v251
    %406 = vmatprep.subr.mxu0 %v254
    %407 = vmatpush1.msra.mxu0 %v253
    %408 = vmatprep.subr.mxu0 %v256
    %409 = vmatpush1.msra.mxu0 %v255
    %410 = vmatprep.subr.mxu0 %v258
    %411 = vmatpush1.msra.mxu0 %v257
    %412 = vmatprep.subr.mxu0 %v260
    %413 = vmatpush1.msra.mxu0 %v259
    %414 = vmatprep.subr.mxu0 %v262
    %415 = vmatpush1.msra.mxu0 %v261
    %416 = vmatprep.subr.mxu0 %v264
    %417 = vmatpush1.msra.mxu0 %v263
    %418 = vmatprep.subr.mxu0 %v266
    %419 = vmatpush1.msra.mxu0 %v265
    %420 = vmatprep.subr.mxu0 %v268
    %421 = vmatpush1.msra.mxu0 %v267
    %422 = vmatprep.subr.mxu0 %v270
    %423 = vmatpush1.msra.mxu0 %v269
    %424 = vmatprep.subr.mxu0 %v272
    %425 = vmatpush1.msra.mxu0 %v271
    %426 = vmatprep.subr.mxu0 0.0
    %427 = vmatpush1.msra.mxu0 0.0
    %428 = vmatprep.subr.mxu0 0.0
    %429 = vmatpush1.msra.mxu0 0.0
    %430 = vmatprep.subr.mxu0 0.0
    %431 = vmatpush1.msra.mxu0 0.0
    %432 = vmatprep.subr.mxu0 0.0
    %433 = vmatpush1.msra.mxu0 0.0
    %434 = vmatprep.subr.mxu0 0.0
    %435 = vmatpush1.msra.mxu0 0.0
    %436 = vmatprep.subr.mxu0 0.0
    %437 = vmatpush1.msra.mxu0 0.0
    %438 = vmatprep.subr.mxu0 0.0
    %439 = vmatpush1.msra.mxu0 0.0
    %440 = vmatprep.subr.mxu0 0.0
    %441 = vmatpush1.msra.mxu0 0.0
    %442 = vmatprep.subr.mxu0 0.0
    %443 = vmatpush1.msra.mxu0 0.0
    %444 = vmatprep.subr.mxu0 0.0
    %445 = vmatpush1.msra.mxu0 0.0
    %446 = vmatprep.subr.mxu0 0.0
    %447 = vmatpush1.msra.mxu0 0.0
    %448 = vmatprep.subr.mxu0 0.0
    %449 = vmatpush1.msra.mxu0 0.0
    %450 = vmatprep.subr.mxu0 0.0
    %451 = vmatpush1.msra.mxu0 0.0
    %452 = vmatprep.subr.mxu0 0.0
    %453 = vmatpush1.msra.mxu0 0.0
    %454 = vmatprep.subr.mxu0 0.0
    %455 = vmatpush1.msra.mxu0 0.0
    %456 = vmatprep.subr.mxu0 0.0
    %457 = vmatpush1.msra.mxu0 0.0
    %458 = vmatprep.mubr.f32.mxu0 0.0
    %459 = vmatmul.mubr.f32.gmra.mrb[0].mxu0 %v174
    %v460 = vpop.f32.mrb[0].mxu0
    %v461 = vadd.f32 %v372, %v460
    %v462 = vpop.f32.mrb[0].mxu0
    %v463 = vadd.f32 %v374, %v462
    %464 = vmatprep.mubr.f32.mxu0 0.0
    %465 = vmatmul.mubr.f32.gmra.mrb[0].mxu0 %v175
    %v466 = vpop.f32.mrb[0].mxu0
    %v467 = vadd.f32 %v378, %v466
    %v468 = vpop.f32.mrb[0].mxu0
    %v469 = vadd.f32 %v380, %v468
    %470 = vmatprep.mubr.f32.mxu0 0.0
    %471 = vmatmul.mubr.f32.gmra.mrb[0].mxu0 %v176
    %v472 = vpop.f32.mrb[0].mxu0
    %v473 = vadd.f32 %v384, %v472
    %v474 = vpop.f32.mrb[0].mxu0
    %v475 = vadd.f32 %v386, %v474
    %476 = vmatprep.mubr.f32.mxu0 0.0
    %477 = vmatmul.mubr.f32.gmra.mrb[0].mxu0 %v177
    %v478 = vpop.f32.mrb[0].mxu0
    %v479 = vadd.f32 %v390, %v478
    %v480 = vpop.f32.mrb[0].mxu0
    %v481 = vadd.f32 %v392, %v480
    %482 = vdwg.mxu0
    %s483 = scalar_lea.vmem [#allocation12], 512
    %v484 = vld [vmem:[%s483] sm:$0xff]
    %v485 = vld [vmem:[%s483 + $0x8] sm:$0xff]
    %v486 = vld [vmem:[%s483 + $0x10] sm:$0xff]
    %v487 = vld [vmem:[%s483 + $0x18] sm:$0xff]
    %v488 = vld [vmem:[%s483 + $0x20] sm:$0xff]
    %v489 = vld [vmem:[%s483 + $0x28] sm:$0xff]
    %v490 = vld [vmem:[%s483 + $0x30] sm:$0xff]
    %v491 = vld [vmem:[%s483 + $0x38] sm:$0xff]
    %v492 = vld [vmem:[%s483 + $0x40] sm:$0xff]
    %v493 = vld [vmem:[%s483 + $0x48] sm:$0xff]
    %v494 = vld [vmem:[%s483 + $0x50] sm:$0xff]
    %v495 = vld [vmem:[%s483 + $0x58] sm:$0xff]
    %v496 = vld [vmem:[%s483 + $0x60] sm:$0xff]
    %v497 = vld [vmem:[%s483 + $0x68] sm:$0xff]
    %v498 = vld [vmem:[%s483 + $0x70] sm:$0xff]
    %v499 = vld [vmem:[%s483 + $0x78] sm:$0xff]
    %v500 = vld [vmem:[%s483 + $0x80] sm:$0xff]
    %v501 = vld [vmem:[%s483 + $0x88] sm:$0xff]
    %v502 = vld [vmem:[%s483 + $0x90] sm:$0xff]
    %v503 = vld [vmem:[%s483 + $0x98] sm:$0xff]
    %v504 = vld [vmem:[%s483 + $0xa0] sm:$0xff]
    %v505 = vld [vmem:[%s483 + $0xa8] sm:$0xff]
    %v506 = vld [vmem:[%s483 + $0xb0] sm:$0xff]
    %v507 = vld [vmem:[%s483 + $0xb8] sm:$0xff]
    %v508 = vld [vmem:[%s483 + $0xc0] sm:$0xff]
    %v509 = vld [vmem:[%s483 + $0xc8] sm:$0xff]
    %v510 = vld [vmem:[%s483 + $0xd0] sm:$0xff]
    %v511 = vld [vmem:[%s483 + $0xd8] sm:$0xff]
    %v512 = vld [vmem:[%s483 + $0xe0] sm:$0xff]
    %v513 = vld [vmem:[%s483 + $0xe8] sm:$0xff]
    %v514 = vld [vmem:[%s483 + $0xf0] sm:$0xff]
    %v515 = vld [vmem:[%s483 + $0xf8] sm:$0xff]
    %516 = vmatprep.subr.mxu0 %v485
    %517 = vmatpush1.msra.mxu0 %v484
    %518 = vmatprep.subr.mxu0 %v487
    %519 = vmatpush1.msra.mxu0 %v486
    %520 = vmatprep.subr.mxu0 %v489
    %521 = vmatpush1.msra.mxu0 %v488
    %522 = vmatprep.subr.mxu0 %v491
    %523 = vmatpush1.msra.mxu0 %v490
    %524 = vmatprep.subr.mxu0 %v493
    %525 = vmatpush1.msra.mxu0 %v492
    %526 = vmatprep.subr.mxu0 %v495
    %527 = vmatpush1.msra.mxu0 %v494
    %528 = vmatprep.subr.mxu0 %v497
    %529 = vmatpush1.msra.mxu0 %v496
    %530 = vmatprep.subr.mxu0 %v499
    %531 = vmatpush1.msra.mxu0 %v498
    %532 = vmatprep.subr.mxu0 %v501
    %533 = vmatpush1.msra.mxu0 %v500
    %534 = vmatprep.subr.mxu0 %v503
    %535 = vmatpush1.msra.mxu0 %v502
    %536 = vmatprep.subr.mxu0 %v505
    %537 = vmatpush1.msra.mxu0 %v504
    %538 = vmatprep.subr.mxu0 %v507
    %539 = vmatpush1.msra.mxu0 %v506
    %540 = vmatprep.subr.mxu0 %v509
    %541 = vmatpush1.msra.mxu0 %v508
    %542 = vmatprep.subr.mxu0 %v511
    %543 = vmatpush1.msra.mxu0 %v510
    %544 = vmatprep.subr.mxu0 %v513
    %545 = vmatpush1.msra.mxu0 %v512
    %546 = vmatprep.subr.mxu0 %v515
    %547 = vmatpush1.msra.mxu0 %v514
    %548 = vmatprep.subr.mxu0 0.0
    %549 = vmatpush1.msra.mxu0 0.0
    %550 = vmatprep.subr.mxu0 0.0
    %551 = vmatpush1.msra.mxu0 0.0
    %552 = vmatprep.subr.mxu0 0.0
    %553 = vmatpush1.msra.mxu0 0.0
    %554 = vmatprep.subr.mxu0 0.0
    %555 = vmatpush1.msra.mxu0 0.0
    %556 = vmatprep.subr.mxu0 0.0
    %557 = vmatpush1.msra.mxu0 0.0
    %558 = vmatprep.subr.mxu0 0.0
    %559 = vmatpush1.msra.mxu0 0.0
    %560 = vmatprep.subr.mxu0 0.0
    %561 = vmatpush1.msra.mxu0 0.0
    %562 = vmatprep.subr.mxu0 0.0
    %563 = vmatpush1.msra.mxu0 0.0
    %564 = vmatprep.subr.mxu0 0.0
    %565 = vmatpush1.msra.mxu0 0.0
    %566 = vmatprep.subr.mxu0 0.0
    %567 = vmatpush1.msra.mxu0 0.0
    %568 = vmatprep.subr.mxu0 0.0
    %569 = vmatpush1.msra.mxu0 0.0
    %570 = vmatprep.subr.mxu0 0.0
    %571 = vmatpush1.msra.mxu0 0.0
    %572 = vmatprep.subr.mxu0 0.0
    %573 = vmatpush1.msra.mxu0 0.0
    %574 = vmatprep.subr.mxu0 0.0
    %575 = vmatpush1.msra.mxu0 0.0
    %576 = vmatprep.subr.mxu0 0.0
    %577 = vmatpush1.msra.mxu0 0.0
    %578 = vmatprep.subr.mxu0 0.0
    %579 = vmatpush1.msra.mxu0 0.0
    %580 = vmatprep.mubr.f32.mxu0 0.0
    %581 = vmatmul.mubr.f32.gmra.mrb[0].mxu0 %v236
    %v582 = vpop.f32.mrb[0].mxu0
    %v583 = vadd.f32 0.0, %v582
    %v584 = vpop.f32.mrb[0].mxu0
    %v585 = vadd.f32 0.0, %v584
    %586 = vmatprep.mubr.f32.mxu0 0.0
    %587 = vmatmul.mubr.f32.gmra.mrb[0].mxu0 %v237
    %v588 = vpop.f32.mrb[0].mxu0
    %v589 = vadd.f32 0.0, %v588
    %v590 = vpop.f32.mrb[0].mxu0
    %v591 = vadd.f32 0.0, %v590
    %592 = vmatprep.mubr.f32.mxu0 0.0
    %593 = vmatmul.mubr.f32.gmra.mrb[0].mxu0 %v238
    %v594 = vpop.f32.mrb[0].mxu0
    %v595 = vadd.f32 0.0, %v594
    %v596 = vpop.f32.mrb[0].mxu0
    %v597 = vadd.f32 0.0, %v596
    %598 = vmatprep.mubr.f32.mxu0 0.0
    %599 = vmatmul.mubr.f32.gmra.mrb[0].mxu0 %v239
    %v600 = vpop.f32.mrb[0].mxu0
    %v601 = vadd.f32 0.0, %v600
    %v602 = vpop.f32.mrb[0].mxu0
    %v603 = vadd.f32 0.0, %v602
    %604 = vdwg.mxu0
    %v605 = vadd.f32 %v461, %v583
    %v606 = vadd.f32 %v463, %v585
    %v607 = vadd.f32 %v467, %v589
    %v608 = vadd.f32 %v469, %v591
    %v609 = vadd.f32 %v473, %v595
    %v610 = vadd.f32 %v475, %v597
    %v611 = vadd.f32 %v479, %v601
    %v612 = vadd.f32 %v481, %v603
    %v613 = vld [vmem:[#allocation13] sm:$0x3]
    %v615 = vlaneseq
    %v616 = vshrl.u32 %v615, 7
    %v617 = vsub.s32 0, %v616
    %v618 = vrot.slane %v613, %v617
    %v619 = vlaneseq
    %v620 = vshrl.u32 %v619, 7
    %v621 = vsub.s32 1, %v620
    %v622 = vrot.slane %v613, %v621
    %v625 = vadd.f32 %v605, %v618
    %v626 = vadd.f32 %v606, %v622
    %v627 = vadd.f32 %v607, %v618
    %v628 = vadd.f32 %v608, %v622
    %v629 = vadd.f32 %v609, %v618
    %v630 = vadd.f32 %v610, %v622
    %v631 = vadd.f32 %v611, %v618
    %v632 = vadd.f32 %v612, %v622
    %vm633 = vcmp.ge.f32.partialorder %v625, 0.0
    %vm634 = vcmp.ge.f32.partialorder %v626, 0.0
    %vm635 = vcmp.ge.f32.partialorder %v627, 0.0
    %vm636 = vcmp.ge.f32.partialorder %v628, 0.0
    %vm637 = vcmp.ge.f32.partialorder %v629, 0.0
    %vm638 = vcmp.ge.f32.partialorder %v630, 0.0
    %vm639 = vcmp.ge.f32.partialorder %v631, 0.0
    %vm640 = vcmp.ge.f32.partialorder %v632, 0.0
    %v641 = vld [vmem:[#allocation15] sm:$0x3]
    %v643 = vlaneseq
    %v644 = vshrl.u32 %v643, 7
    %v645 = vsub.s32 0, %v644
    %v646 = vrot.slane %v641, %v645
    %v647 = vlaneseq
    %v648 = vshrl.u32 %v647, 7
    %v649 = vsub.s32 1, %v648
    %v650 = vrot.slane %v641, %v649
    %v653 = vmul.f32 %v646, %v625
    %v654 = vmul.f32 %v650, %v626
    %v655 = vmul.f32 %v646, %v627
    %v656 = vmul.f32 %v650, %v628
    %v657 = vmul.f32 %v646, %v629
    %v658 = vmul.f32 %v650, %v630
    %v659 = vmul.f32 %v646, %v631
    %v660 = vmul.f32 %v650, %v632
    %v661 = vsel %vm633, %v625, %v653
    %v662 = vsel %vm634, %v626, %v654
    %v663 = vsel %vm635, %v627, %v655
    %v664 = vsel %vm636, %v628, %v656
    %v665 = vsel %vm637, %v629, %v657
    %v666 = vsel %vm638, %v630, %v658
    %v667 = vsel %vm639, %v631, %v659
    %v668 = vsel %vm640, %v632, %v660
    %v669 = vlaneseq
    %vm670 = vcmp.ge.s32.totalorder %v669, 0
    %vm671 = vcmp.lt.s32.totalorder %v669, 256
    %vm672 = vmand %vm670, %vm671
    %673 = vst.msk [vmem:[#allocation3] ss:$8 sm:$0x3] %vm672, 0.0
    %674 = vst.msk [vmem:[#allocation3] ss:$8 sm:$0x0] %vm672, 0.0
    %s675 = scalar_lea.vmem [#allocation3], 65
    %676 = vst.msk [vmem:[%s675] ss:$8 sm:$0x3] %vm672, 0.0
    %677 = vst.msk [vmem:[%s675] ss:$8 sm:$0x0] %vm672, 0.0
    %vm686 = vcmask 1040384
    %v687 = vrot.slane %v661, 7
    %v688 = vrot.slane %v662, 7
    %v689 = vrot.slane %v663, 7
    %v690 = vsel %vm686, %v687, %v689
    %v691 = vrot.slane %v664, 7
    %v692 = vsel %vm686, %v688, %v691
    %v693 = vrot.slane %v665, 7
    %v694 = vsel %vm686, %v689, %v693
    %v695 = vrot.slane %v666, 7
    %v696 = vsel %vm686, %v691, %v695
    %v697 = vrot.slane %v667, 7
    %v698 = vsel %vm686, %v693, %v697
    %v699 = vrot.slane %v668, 7
    %v700 = vsel %vm686, %v695, %v699
    %711 = vst [vmem:[#allocation3] sm:$0xfe] %v687
    %712 = vst [vmem:[#allocation3 + $0x8] sm:$0xfe] %v688
    %713 = vst [vmem:[#allocation3 + $0x10] sm:$0xff] %v690
    %714 = vst [vmem:[#allocation3 + $0x18] sm:$0xff] %v692
    %715 = vst [vmem:[#allocation3 + $0x20] sm:$0xff] %v694
    %716 = vst [vmem:[#allocation3 + $0x28] sm:$0xff] %v696
    %717 = vst [vmem:[#allocation3 + $0x30] sm:$0xff] %v698
    %718 = vst [vmem:[#allocation3 + $0x38] sm:$0xff] %v700
    %719 = vst [vmem:[#allocation3 + $0x40] sm:$0x1] %v697
    %720 = vst [vmem:[#allocation3 + $0x48] sm:$0x1] %v699
    %v721 = vld [vmem:[#allocation3] sm:$0xff]
    %v722 = vld [vmem:[#allocation3 + $0x8] sm:$0xff]
    %v723 = vld [vmem:[#allocation3 + $0x10] sm:$0xff]
    %v724 = vld [vmem:[#allocation3 + $0x18] sm:$0xff]
    %v725 = vld [vmem:[#allocation3 + $0x20] sm:$0xff]
    %v726 = vld [vmem:[#allocation3 + $0x28] sm:$0xff]
    %v727 = vld [vmem:[#allocation3 + $0x30] sm:$0xff]
    %v728 = vld [vmem:[#allocation3 + $0x38] sm:$0xff]
    %v729 = vmul.f32 %v721, %v191
    %v730 = vmul.f32 %v722, %v191
    %v731 = vmul.f32 %v723, %v196
    %v732 = vmul.f32 %v724, %v196
    %v733 = vmul.f32 %v725, %v201
    %v734 = vmul.f32 %v726, %v201
    %v735 = vmul.f32 %v727, %v206
    %v736 = vmul.f32 %v728, %v206
    %v737 = vld [vmem:[#allocation3] sm:$0xfc]
    %v738 = vld [vmem:[#allocation3 + $0x8] sm:$0xfc]
    %v739 = vld [vmem:[#allocation3 + $0x40] sm:$0x3]
    %v740 = vld [vmem:[#allocation3 + $0x48] sm:$0x3]
    %vm741 = vcmask 1041408
    %v742 = vrot.slane %v219, 6
    %v743 = vrot.slane %v224, 6
    %v744 = vsel %vm741, %v742, %v743
    %v745 = vrot.slane %v229, 6
    %v746 = vsel %vm741, %v743, %v745
    %v747 = vrot.slane %v234, 6
    %v748 = vsel %vm741, %v745, %v747
    %v754 = vmul.f32 %v737, %v742
    %v755 = vmul.f32 %v738, %v742
    %v756 = vmul.f32 %v723, %v744
    %v757 = vmul.f32 %v724, %v744
    %v758 = vmul.f32 %v725, %v746
    %v759 = vmul.f32 %v726, %v746
    %v760 = vmul.f32 %v727, %v748
    %v761 = vmul.f32 %v728, %v748
    %v762 = vmul.f32 %v739, %v747
    %v763 = vmul.f32 %v740, %v747
    %s764 = scalar_lea.vmem [#allocation16], 256
    %v765 = vld [vmem:[%s764] sm:$0xff]
    %v766 = vld [vmem:[%s764 + $0x8] sm:$0xff]
    %v767 = vld [vmem:[%s764 + $0x10] sm:$0xff]
    %v768 = vld [vmem:[%s764 + $0x18] sm:$0xff]
    %v769 = vld [vmem:[%s764 + $0x20] sm:$0xff]
    %v770 = vld [vmem:[%s764 + $0x28] sm:$0xff]
    %v771 = vld [vmem:[%s764 + $0x30] sm:$0xff]
    %v772 = vld [vmem:[%s764 + $0x38] sm:$0xff]
    %v773 = vld [vmem:[%s764 + $0x40] sm:$0xff]
    %v774 = vld [vmem:[%s764 + $0x48] sm:$0xff]
    %v775 = vld [vmem:[%s764 + $0x50] sm:$0xff]
    %v776 = vld [vmem:[%s764 + $0x58] sm:$0xff]
    %v777 = vld [vmem:[%s764 + $0x60] sm:$0xff]
    %v778 = vld [vmem:[%s764 + $0x68] sm:$0xff]
    %v779 = vld [vmem:[%s764 + $0x70] sm:$0xff]
    %v780 = vld [vmem:[%s764 + $0x78] sm:$0xff]
    %v781 = vld [vmem:[%s764 + $0x80] sm:$0xff]
    %v782 = vld [vmem:[%s764 + $0x88] sm:$0xff]
    %v783 = vld [vmem:[%s764 + $0x90] sm:$0xff]
    %v784 = vld [vmem:[%s764 + $0x98] sm:$0xff]
    %v785 = vld [vmem:[%s764 + $0xa0] sm:$0xff]
    %v786 = vld [vmem:[%s764 + $0xa8] sm:$0xff]
    %v787 = vld [vmem:[%s764 + $0xb0] sm:$0xff]
    %v788 = vld [vmem:[%s764 + $0xb8] sm:$0xff]
    %v789 = vld [vmem:[%s764 + $0xc0] sm:$0xff]
    %v790 = vld [vmem:[%s764 + $0xc8] sm:$0xff]
    %v791 = vld [vmem:[%s764 + $0xd0] sm:$0xff]
    %v792 = vld [vmem:[%s764 + $0xd8] sm:$0xff]
    %v793 = vld [vmem:[%s764 + $0xe0] sm:$0xff]
    %v794 = vld [vmem:[%s764 + $0xe8] sm:$0xff]
    %v795 = vld [vmem:[%s764 + $0xf0] sm:$0xff]
    %v796 = vld [vmem:[%s764 + $0xf8] sm:$0xff]
    %v797 = vld [vmem:[#allocation16] sm:$0xff]
    %v798 = vld [vmem:[#allocation16 + $0x8] sm:$0xff]
    %v799 = vld [vmem:[#allocation16 + $0x10] sm:$0xff]
    %v800 = vld [vmem:[#allocation16 + $0x18] sm:$0xff]
    %v801 = vld [vmem:[#allocation16 + $0x20] sm:$0xff]
    %v802 = vld [vmem:[#allocation16 + $0x28] sm:$0xff]
    %v803 = vld [vmem:[#allocation16 + $0x30] sm:$0xff]
    %v804 = vld [vmem:[#allocation16 + $0x38] sm:$0xff]
    %v805 = vld [vmem:[#allocation16 + $0x40] sm:$0xff]
    %v806 = vld [vmem:[#allocation16 + $0x48] sm:$0xff]
    %v807 = vld [vmem:[#allocation16 + $0x50] sm:$0xff]
    %v808 = vld [vmem:[#allocation16 + $0x58] sm:$0xff]
    %v809 = vld [vmem:[#allocation16 + $0x60] sm:$0xff]
    %v810 = vld [vmem:[#allocation16 + $0x68] sm:$0xff]
    %v811 = vld [vmem:[#allocation16 + $0x70] sm:$0xff]
    %v812 = vld [vmem:[#allocation16 + $0x78] sm:$0xff]
    %v813 = vld [vmem:[#allocation16 + $0x80] sm:$0xff]
    %v814 = vld [vmem:[#allocation16 + $0x88] sm:$0xff]
    %v815 = vld [vmem:[#allocation16 + $0x90] sm:$0xff]
    %v816 = vld [vmem:[#allocation16 + $0x98] sm:$0xff]
    %v817 = vld [vmem:[#allocation16 + $0xa0] sm:$0xff]
    %v818 = vld [vmem:[#allocation16 + $0xa8] sm:$0xff]
    %v819 = vld [vmem:[#allocation16 + $0xb0] sm:$0xff]
    %v820 = vld [vmem:[#allocation16 + $0xb8] sm:$0xff]
    %v821 = vld [vmem:[#allocation16 + $0xc0] sm:$0xff]
    %v822 = vld [vmem:[#allocation16 + $0xc8] sm:$0xff]
    %v823 = vld [vmem:[#allocation16 + $0xd0] sm:$0xff]
    %v824 = vld [vmem:[#allocation16 + $0xd8] sm:$0xff]
    %v825 = vld [vmem:[#allocation16 + $0xe0] sm:$0xff]
    %v826 = vld [vmem:[#allocation16 + $0xe8] sm:$0xff]
    %v827 = vld [vmem:[#allocation16 + $0xf0] sm:$0xff]
    %v828 = vld [vmem:[#allocation16 + $0xf8] sm:$0xff]
    %829 = vmatprep.subr.mxu0 0.0
    %830 = vmatpush1.msra.mxu0 %v797
    %831 = vmatprep.subr.mxu0 0.0
    %832 = vmatpush1.msra.mxu0 %v798
    %833 = vmatprep.subr.mxu0 0.0
    %834 = vmatpush1.msra.mxu0 %v799
    %835 = vmatprep.subr.mxu0 0.0
    %836 = vmatpush1.msra.mxu0 %v800
    %837 = vmatprep.subr.mxu0 0.0
    %838 = vmatpush1.msra.mxu0 %v801
    %839 = vmatprep.subr.mxu0 0.0
    %840 = vmatpush1.msra.mxu0 %v802
    %841 = vmatprep.subr.mxu0 0.0
    %842 = vmatpush1.msra.mxu0 %v803
    %843 = vmatprep.subr.mxu0 0.0
    %844 = vmatpush1.msra.mxu0 %v804
    %845 = vmatprep.subr.mxu0 0.0
    %846 = vmatpush1.msra.mxu0 %v805
    %847 = vmatprep.subr.mxu0 0.0
    %848 = vmatpush1.msra.mxu0 %v806
    %849 = vmatprep.subr.mxu0 0.0
    %850 = vmatpush1.msra.mxu0 %v807
    %851 = vmatprep.subr.mxu0 0.0
    %852 = vmatpush1.msra.mxu0 %v808
    %853 = vmatprep.subr.mxu0 0.0
    %854 = vmatpush1.msra.mxu0 %v809
    %855 = vmatprep.subr.mxu0 0.0
    %856 = vmatpush1.msra.mxu0 %v810
    %857 = vmatprep.subr.mxu0 0.0
    %858 = vmatpush1.msra.mxu0 %v811
    %859 = vmatprep.subr.mxu0 0.0
    %860 = vmatpush1.msra.mxu0 %v812
    %861 = vmatprep.subr.mxu0 0.0
    %862 = vmatpush1.msra.mxu0 %v813
    %863 = vmatprep.subr.mxu0 0.0
    %864 = vmatpush1.msra.mxu0 %v814
    %865 = vmatprep.subr.mxu0 0.0
    %866 = vmatpush1.msra.mxu0 %v815
    %867 = vmatprep.subr.mxu0 0.0
    %868 = vmatpush1.msra.mxu0 %v816
    %869 = vmatprep.subr.mxu0 0.0
    %870 = vmatpush1.msra.mxu0 %v817
    %871 = vmatprep.subr.mxu0 0.0
    %872 = vmatpush1.msra.mxu0 %v818
    %873 = vmatprep.subr.mxu0 0.0
    %874 = vmatpush1.msra.mxu0 %v819
    %875 = vmatprep.subr.mxu0 0.0
    %876 = vmatpush1.msra.mxu0 %v820
    %877 = vmatprep.subr.mxu0 0.0
    %878 = vmatpush1.msra.mxu0 %v821
    %879 = vmatprep.subr.mxu0 0.0
    %880 = vmatpush1.msra.mxu0 %v822
    %881 = vmatprep.subr.mxu0 0.0
    %882 = vmatpush1.msra.mxu0 %v823
    %883 = vmatprep.subr.mxu0 0.0
    %884 = vmatpush1.msra.mxu0 %v824
    %885 = vmatprep.subr.mxu0 0.0
    %886 = vmatpush1.msra.mxu0 %v825
    %887 = vmatprep.subr.mxu0 0.0
    %888 = vmatpush1.msra.mxu0 %v826
    %889 = vmatprep.subr.mxu0 0.0
    %890 = vmatpush1.msra.mxu0 %v827
    %891 = vmatprep.subr.mxu0 0.0
    %892 = vmatpush1.msra.mxu0 %v828
    %893 = vmatprep.mubr.f32.mxu0 %v730
    %894 = vmatmul.mubr.f32.gmra.mrb[0].mxu0 %v729
    %v895 = vpop.f32.mrb[0].mxu0
    %v896 = vadd.f32 0.0, %v895
    %v897 = vpop.f32.mrb[0].mxu0
    %898 = vmatprep.mubr.f32.mxu0 %v732
    %899 = vmatmul.mubr.f32.gmra.mrb[0].mxu0 %v731
    %v900 = vpop.f32.mrb[0].mxu0
    %v901 = vadd.f32 0.0, %v900
    %v902 = vpop.f32.mrb[0].mxu0
    %903 = vmatprep.mubr.f32.mxu0 %v734
    %904 = vmatmul.mubr.f32.gmra.mrb[0].mxu0 %v733
    %v905 = vpop.f32.mrb[0].mxu0
    %v906 = vadd.f32 0.0, %v905
    %v907 = vpop.f32.mrb[0].mxu0
    %908 = vmatprep.mubr.f32.mxu0 %v736
    %909 = vmatmul.mubr.f32.gmra.mrb[0].mxu0 %v735
    %v910 = vpop.f32.mrb[0].mxu0
    %v911 = vadd.f32 0.0, %v910
    %v912 = vpop.f32.mrb[0].mxu0
    %913 = vdwg.mxu0
    %914 = vmatprep.subr.mxu0 0.0
    %915 = vmatpush1.msra.mxu0 %v765
    %916 = vmatprep.subr.mxu0 0.0
    %917 = vmatpush1.msra.mxu0 %v766
    %918 = vmatprep.subr.mxu0 0.0
    %919 = vmatpush1.msra.mxu0 %v767
    %920 = vmatprep.subr.mxu0 0.0
    %921 = vmatpush1.msra.mxu0 %v768
    %922 = vmatprep.subr.mxu0 0.0
    %923 = vmatpush1.msra.mxu0 %v769
    %924 = vmatprep.subr.mxu0 0.0
    %925 = vmatpush1.msra.mxu0 %v770
    %926 = vmatprep.subr.mxu0 0.0
    %927 = vmatpush1.msra.mxu0 %v771
    %928 = vmatprep.subr.mxu0 0.0
    %929 = vmatpush1.msra.mxu0 %v772
    %930 = vmatprep.subr.mxu0 0.0
    %931 = vmatpush1.msra.mxu0 %v773
    %932 = vmatprep.subr.mxu0 0.0
    %933 = vmatpush1.msra.mxu0 %v774
    %934 = vmatprep.subr.mxu0 0.0
    %935 = vmatpush1.msra.mxu0 %v775
    %936 = vmatprep.subr.mxu0 0.0
    %937 = vmatpush1.msra.mxu0 %v776
    %938 = vmatprep.subr.mxu0 0.0
    %939 = vmatpush1.msra.mxu0 %v777
    %940 = vmatprep.subr.mxu0 0.0
    %941 = vmatpush1.msra.mxu0 %v778
    %942 = vmatprep.subr.mxu0 0.0
    %943 = vmatpush1.msra.mxu0 %v779
    %944 = vmatprep.subr.mxu0 0.0
    %945 = vmatpush1.msra.mxu0 %v780
    %946 = vmatprep.subr.mxu0 0.0
    %947 = vmatpush1.msra.mxu0 %v781
    %948 = vmatprep.subr.mxu0 0.0
    %949 = vmatpush1.msra.mxu0 %v782
    %950 = vmatprep.subr.mxu0 0.0
    %951 = vmatpush1.msra.mxu0 %v783
    %952 = vmatprep.subr.mxu0 0.0
    %953 = vmatpush1.msra.mxu0 %v784
    %954 = vmatprep.subr.mxu0 0.0
    %955 = vmatpush1.msra.mxu0 %v785
    %956 = vmatprep.subr.mxu0 0.0
    %957 = vmatpush1.msra.mxu0 %v786
    %958 = vmatprep.subr.mxu0 0.0
    %959 = vmatpush1.msra.mxu0 %v787
    %960 = vmatprep.subr.mxu0 0.0
    %961 = vmatpush1.msra.mxu0 %v788
    %962 = vmatprep.subr.mxu0 0.0
    %963 = vmatpush1.msra.mxu0 %v789
    %964 = vmatprep.subr.mxu0 0.0
    %965 = vmatpush1.msra.mxu0 %v790
    %966 = vmatprep.subr.mxu0 0.0
    %967 = vmatpush1.msra.mxu0 %v791
    %968 = vmatprep.subr.mxu0 0.0
    %969 = vmatpush1.msra.mxu0 %v792
    %970 = vmatprep.subr.mxu0 0.0
    %971 = vmatpush1.msra.mxu0 %v793
    %972 = vmatprep.subr.mxu0 0.0
    %973 = vmatpush1.msra.mxu0 %v794
    %974 = vmatprep.subr.mxu0 0.0
    %975 = vmatpush1.msra.mxu0 %v795
    %976 = vmatprep.subr.mxu0 0.0
    %977 = vmatpush1.msra.mxu0 %v796
    %978 = vmatprep.mubr.f32.mxu0 %v662
    %979 = vmatmul.mubr.f32.gmra.mrb[0].mxu0 %v661
    %v980 = vpop.f32.mrb[0].mxu0
    %v981 = vadd.f32 %v896, %v980
    %v982 = vpop.f32.mrb[0].mxu0
    %983 = vmatprep.mubr.f32.mxu0 %v664
    %984 = vmatmul.mubr.f32.gmra.mrb[0].mxu0 %v663
    %v985 = vpop.f32.mrb[0].mxu0
    %v986 = vadd.f32 %v901, %v985
    %v987 = vpop.f32.mrb[0].mxu0
    %988 = vmatprep.mubr.f32.mxu0 %v666
    %989 = vmatmul.mubr.f32.gmra.mrb[0].mxu0 %v665
    %v990 = vpop.f32.mrb[0].mxu0
    %v991 = vadd.f32 %v906, %v990
    %v992 = vpop.f32.mrb[0].mxu0
    %993 = vmatprep.mubr.f32.mxu0 %v668
    %994 = vmatmul.mubr.f32.gmra.mrb[0].mxu0 %v667
    %v995 = vpop.f32.mrb[0].mxu0
    %v996 = vadd.f32 %v911, %v995
    %v997 = vpop.f32.mrb[0].mxu0
    %998 = vdwg.mxu0
    %s999 = scalar_lea.vmem [#allocation16], 512
    %v1000 = vld [vmem:[%s999] sm:$0xff]
    %v1001 = vld [vmem:[%s999 + $0x8] sm:$0xff]
    %v1002 = vld [vmem:[%s999 + $0x10] sm:$0xff]
    %v1003 = vld [vmem:[%s999 + $0x18] sm:$0xff]
    %v1004 = vld [vmem:[%s999 + $0x20] sm:$0xff]
    %v1005 = vld [vmem:[%s999 + $0x28] sm:$0xff]
    %v1006 = vld [vmem:[%s999 + $0x30] sm:$0xff]
    %v1007 = vld [vmem:[%s999 + $0x38] sm:$0xff]
    %v1008 = vld [vmem:[%s999 + $0x40] sm:$0xff]
    %v1009 = vld [vmem:[%s999 + $0x48] sm:$0xff]
    %v1010 = vld [vmem:[%s999 + $0x50] sm:$0xff]
    %v1011 = vld [vmem:[%s999 + $0x58] sm:$0xff]
    %v1012 = vld [vmem:[%s999 + $0x60] sm:$0xff]
    %v1013 = vld [vmem:[%s999 + $0x68] sm:$0xff]
    %v1014 = vld [vmem:[%s999 + $0x70] sm:$0xff]
    %v1015 = vld [vmem:[%s999 + $0x78] sm:$0xff]
    %v1016 = vld [vmem:[%s999 + $0x80] sm:$0xff]
    %v1017 = vld [vmem:[%s999 + $0x88] sm:$0xff]
    %v1018 = vld [vmem:[%s999 + $0x90] sm:$0xff]
    %v1019 = vld [vmem:[%s999 + $0x98] sm:$0xff]
    %v1020 = vld [vmem:[%s999 + $0xa0] sm:$0xff]
    %v1021 = vld [vmem:[%s999 + $0xa8] sm:$0xff]
    %v1022 = vld [vmem:[%s999 + $0xb0] sm:$0xff]
    %v1023 = vld [vmem:[%s999 + $0xb8] sm:$0xff]
    %v1024 = vld [vmem:[%s999 + $0xc0] sm:$0xff]
    %v1025 = vld [vmem:[%s999 + $0xc8] sm:$0xff]
    %v1026 = vld [vmem:[%s999 + $0xd0] sm:$0xff]
    %v1027 = vld [vmem:[%s999 + $0xd8] sm:$0xff]
    %v1028 = vld [vmem:[%s999 + $0xe0] sm:$0xff]
    %v1029 = vld [vmem:[%s999 + $0xe8] sm:$0xff]
    %v1030 = vld [vmem:[%s999 + $0xf0] sm:$0xff]
    %v1031 = vld [vmem:[%s999 + $0xf8] sm:$0xff]
    %vm1042 = vcmask 1045504
    %v1043 = vrot.slane %v754, 2
    %v1044 = vrot.slane %v756, 2
    %v1045 = vsel %vm1042, %v1043, %v1044
    %v1046 = vrot.slane %v755, 2
    %v1047 = vrot.slane %v757, 2
    %v1048 = vsel %vm1042, %v1046, %v1047
    %v1049 = vrot.slane %v758, 2
    %v1050 = vsel %vm1042, %v1044, %v1049
    %v1051 = vrot.slane %v759, 2
    %v1052 = vsel %vm1042, %v1047, %v1051
    %v1053 = vrot.slane %v760, 2
    %v1054 = vsel %vm1042, %v1049, %v1053
    %v1055 = vrot.slane %v761, 2
    %v1056 = vsel %vm1042, %v1051, %v1055
    %v1057 = vrot.slane %v762, 2
    %v1058 = vsel %vm1042, %v1053, %v1057
    %v1059 = vrot.slane %v763, 2
    %v1060 = vsel %vm1042, %v1055, %v1059
    %1069 = vmatprep.subr.mxu0 0.0
    %1070 = vmatpush1.msra.mxu0 %v1000
    %1071 = vmatprep.subr.mxu0 0.0
    %1072 = vmatpush1.msra.mxu0 %v1001
    %1073 = vmatprep.subr.mxu0 0.0
    %1074 = vmatpush1.msra.mxu0 %v1002
    %1075 = vmatprep.subr.mxu0 0.0
    %1076 = vmatpush1.msra.mxu0 %v1003
    %1077 = vmatprep.subr.mxu0 0.0
    %1078 = vmatpush1.msra.mxu0 %v1004
    %1079 = vmatprep.subr.mxu0 0.0
    %1080 = vmatpush1.msra.mxu0 %v1005
    %1081 = vmatprep.subr.mxu0 0.0
    %1082 = vmatpush1.msra.mxu0 %v1006
    %1083 = vmatprep.subr.mxu0 0.0
    %1084 = vmatpush1.msra.mxu0 %v1007
    %1085 = vmatprep.subr.mxu0 0.0
    %1086 = vmatpush1.msra.mxu0 %v1008
    %1087 = vmatprep.subr.mxu0 0.0
    %1088 = vmatpush1.msra.mxu0 %v1009
    %1089 = vmatprep.subr.mxu0 0.0
    %1090 = vmatpush1.msra.mxu0 %v1010
    %1091 = vmatprep.subr.mxu0 0.0
    %1092 = vmatpush1.msra.mxu0 %v1011
    %1093 = vmatprep.subr.mxu0 0.0
    %1094 = vmatpush1.msra.mxu0 %v1012
    %1095 = vmatprep.subr.mxu0 0.0
    %1096 = vmatpush1.msra.mxu0 %v1013
    %1097 = vmatprep.subr.mxu0 0.0
    %1098 = vmatpush1.msra.mxu0 %v1014
    %1099 = vmatprep.subr.mxu0 0.0
    %1100 = vmatpush1.msra.mxu0 %v1015
    %1101 = vmatprep.subr.mxu0 0.0
    %1102 = vmatpush1.msra.mxu0 %v1016
    %1103 = vmatprep.subr.mxu0 0.0
    %1104 = vmatpush1.msra.mxu0 %v1017
    %1105 = vmatprep.subr.mxu0 0.0
    %1106 = vmatpush1.msra.mxu0 %v1018
    %1107 = vmatprep.subr.mxu0 0.0
    %1108 = vmatpush1.msra.mxu0 %v1019
    %1109 = vmatprep.subr.mxu0 0.0
    %1110 = vmatpush1.msra.mxu0 %v1020
    %1111 = vmatprep.subr.mxu0 0.0
    %1112 = vmatpush1.msra.mxu0 %v1021
    %1113 = vmatprep.subr.mxu0 0.0
    %1114 = vmatpush1.msra.mxu0 %v1022
    %1115 = vmatprep.subr.mxu0 0.0
    %1116 = vmatpush1.msra.mxu0 %v1023
    %1117 = vmatprep.subr.mxu0 0.0
    %1118 = vmatpush1.msra.mxu0 %v1024
    %1119 = vmatprep.subr.mxu0 0.0
    %1120 = vmatpush1.msra.mxu0 %v1025
    %1121 = vmatprep.subr.mxu0 0.0
    %1122 = vmatpush1.msra.mxu0 %v1026
    %1123 = vmatprep.subr.mxu0 0.0
    %1124 = vmatpush1.msra.mxu0 %v1027
    %1125 = vmatprep.subr.mxu0 0.0
    %1126 = vmatpush1.msra.mxu0 %v1028
    %1127 = vmatprep.subr.mxu0 0.0
    %1128 = vmatpush1.msra.mxu0 %v1029
    %1129 = vmatprep.subr.mxu0 0.0
    %1130 = vmatpush1.msra.mxu0 %v1030
    %1131 = vmatprep.subr.mxu0 0.0
    %1132 = vmatpush1.msra.mxu0 %v1031
    %1133 = vmatprep.mubr.f32.mxu0 %v1048
    %1134 = vmatmul.mubr.f32.gmra.mrb[0].mxu0 %v1045
    %v1135 = vpop.f32.mrb[0].mxu0
    %v1136 = vadd.f32 0.0, %v1135
    %v1137 = vpop.f32.mrb[0].mxu0
    %1138 = vmatprep.mubr.f32.mxu0 %v1052
    %1139 = vmatmul.mubr.f32.gmra.mrb[0].mxu0 %v1050
    %v1140 = vpop.f32.mrb[0].mxu0
    %v1141 = vadd.f32 0.0, %v1140
    %v1142 = vpop.f32.mrb[0].mxu0
    %1143 = vmatprep.mubr.f32.mxu0 %v1056
    %1144 = vmatmul.mubr.f32.gmra.mrb[0].mxu0 %v1054
    %v1145 = vpop.f32.mrb[0].mxu0
    %v1146 = vadd.f32 0.0, %v1145
    %v1147 = vpop.f32.mrb[0].mxu0
    %1148 = vmatprep.mubr.f32.mxu0 %v1060
    %1149 = vmatmul.mubr.f32.gmra.mrb[0].mxu0 %v1058
    %v1150 = vpop.f32.mrb[0].mxu0
    %v1151 = vadd.f32 0.0, %v1150
    %v1152 = vpop.f32.mrb[0].mxu0
    %1153 = vdwg.mxu0
    %v1154 = vadd.f32 %v981, %v1136
    %v1155 = vadd.f32 %v986, %v1141
    %v1156 = vadd.f32 %v991, %v1146
    %v1157 = vadd.f32 %v996, %v1151
    %v1158 = vld [vmem:[#allocation18] sm:$0x1]
    %v1160 = vlaneseq
    %v1161 = vshrl.u32 %v1160, 7
    %v1162 = vsub.s32 0, %v1161
    %v1163 = vrot.slane %v1158, %v1162
    %v1165 = vadd.f32 %v1154, %v1163
    %v1166 = vadd.f32 %v1155, %v1163
    %v1167 = vadd.f32 %v1156, %v1163
    %v1168 = vadd.f32 %v1157, %v1163
    %v1169 = vadd.f32 %v1165, %v147
    %v1170 = vadd.f32 %v1166, %v148
    %v1171 = vadd.f32 %v1167, %v149
    %v1172 = vadd.f32 %v1168, %v150
    %1173 = vst [vmem:[#allocation19] sm:$0xff] %v1169
    %1174 = vst [vmem:[#allocation19 + $0x8] sm:$0xff] %v1170
    %1175 = vst [vmem:[#allocation19 + $0x10] sm:$0xff] %v1171
    %1176 = vst [vmem:[#allocation19 + $0x18] sm:$0xff] %v1172
    // Predicated region
    $region74: #{tpu_custom_call.1} parent=1 // pred_check
      _
    $region75: #{tpu_custom_call.1} parent=1 // pred_check_branch
      %1178 = sbr.rel (0) target = $region77
    $region76: #{tpu_custom_call.1} parent=1 // pred_region
      %s1180 = ssub.s32 512, 512
      %1181 = vsyncadd [#allocation6], %s1180
      %s1182 = sshll.u32 [#allocation19], 4
      %s1183 = int_to_ptr.vmem [resolvable:$true] %s1182
      %1188 = dma.vmem_to_hbm [thread:$0]  %s1183, 512, %s9, [#allocation6], 128, 128, 8
    $region77: #{tpu_custom_call.1} parent=1 // pred_fallthru
      _
    // Predicated region
    $region78: #{tpu_custom_call.1} parent=1 // pred_check
      _
    $region79: #{tpu_custom_call.1} parent=1 // pred_check_branch
      %1190 = sbr.rel (0) target = $region81
    $region80: #{tpu_custom_call.1} parent=1 // pred_region
      %1191 = dma.done [#allocation6], 512
    $region81: #{tpu_custom_call.1} parent=1 // pred_fallthru
      _
    %1192 = vsyncpa [#allocation5], 1
    %1193 = vsyncpa [#allocation8], 1
    %1194 = vsyncpa [#allocation11], 1
    %1195 = vsyncpa [#allocation14], 1
    %1196 = vsyncpa [#allocation17], 1
    %1197 = vsyncpa [#allocation6], 1

</llo_original>
